<compile_context>
chip_gen: v7x
topology: tpu7x:2x2x1
jax: 0.10.0
libtpu: 0.0.40
codegen_flags: <defaults>
</compile_context>

<pallas_src>
import math
import functools

import jax
import jax.numpy as jnp
from jax.experimental import pallas as pl
from jax.experimental.pallas import tpu as pltpu


# ---------------------------------------------------------------------------
# In-kernel helpers
# ---------------------------------------------------------------------------
def _layer_norm(x, a, b, eps=1e-6):
    # net.py LayerNorm: torch.std uses Bessel correction (ddof=1) and divides by
    # (std + eps), not sqrt(var + eps).  Single-pass stats (sum and sum-of-squares)
    # halve the serialized cross-lane XLU reductions; fine at D=32 (verify tolerance
    # before scaling D / activation magnitude).
    n = x.shape[-1]
    s = jnp.sum(x, axis=-1, keepdims=True)
    sq = jnp.sum(x * x, axis=-1, keepdims=True)
    mean = s * (1.0 / n)
    var = (sq - n * mean * mean) * (1.0 / (n - 1))
    std = jnp.sqrt(jnp.maximum(var, 0.0))
    inv = pl.reciprocal(std + eps, approx=True)     # EUP slot, ~free
    return a * (x - mean) * inv + b


# ---------------------------------------------------------------------------
# Encoder layer kernel.  One grid step processes TB examples (TB*S rows) fully
# in VMEM: pre-LN self-attention + residual, pre-LN FFN + residual.
# If fuse_cls=True the final LayerNorm + classification head run in the same
# kernel on token 0 of each example and the output is the per-example logits.
# ---------------------------------------------------------------------------
def encoder_layer_kernel(x_ref, bias_ref,
                         n1a_ref, n1b_ref, wqkv_ref, bqkv_ref, wo_ref, bo_ref,
                         n2a_ref, n2b_ref, w1_ref, b1_ref, w2_ref, b2_ref,
                         *rest, n_heads, seq_len, block_batch, fuse_cls):
    if fuse_cls:
        na_ref, nb_ref, cw1_ref, cb1_ref, cw2_ref, cb2_ref, out_ref = rest
    else:
        (out_ref,) = rest

    H, S, TB = n_heads, seq_len, block_batch
    M, D = x_ref.shape                      # block (TB*S, D)
    dk = D // H

    x = x_ref[...].astype(jnp.float32)      # activations carried bf16 in HBM

    # ---- pre-LN multi-head self attention ----
    ln1 = _layer_norm(x, n1a_ref[...], n1b_ref[...]).astype(jnp.bfloat16)
    # Fused QKV: single bf16 MXU matmul (1/sqrt(d_k) pre-folded into Q weight/bias).
    qkv = (jnp.dot(ln1, wqkv_ref[...], preferred_element_type=jnp.float32)
           + bqkv_ref[...]).astype(jnp.bfloat16)                    # (M, 3D)

    def split_heads(t2):
        # (M, D) -> (H*TB, S, dk), batch index g = h*TB + e.  Lane slices +
        # leading-dim concat only (robust Mosaic lowering; no 4-D transpose).
        t3 = t2.reshape(TB, S, D)
        return jnp.concatenate(
            [t3[:, :, h * dk:(h + 1) * dk] for h in range(H)], axis=0)

    qh = split_heads(qkv[:, 0:D])
    kh = split_heads(qkv[:, D:2 * D])
    vh = split_heads(qkv[:, 2 * D:3 * D])

    # One head+example-batched score tensor / softmax / context matmul.
    scores = jnp.einsum('gqd,gkd->gqk', qh, kh,
                        preferred_element_type=jnp.float32)         # (H*TB, S, S)
    # Additive mask bias (host precomputed (mask-1)*1e9): one add, no int compare /
    # select.  Matches masked_fill to float precision for rows with >=1 unmasked key
    # (fully-masked rows would differ; none occur in the demo).
    bias = jnp.concatenate([bias_ref[...]] * H, axis=0)              # (H*TB, 1, S)
    scores = scores + bias
    m = jnp.max(scores, axis=-1, keepdims=True)
    e = jnp.exp(scores - m)          # f32 exp (v5e-safe; bf16 exp only pays on v6e/v7x at large S)
    p = (e * pl.reciprocal(jnp.sum(e, axis=-1, keepdims=True), approx=True)
         ).astype(jnp.bfloat16)
    ctx = jnp.einsum('gqk,gkd->gqd', p, vh,
                     preferred_element_type=jnp.float32)             # (H*TB, S, dk)
    ctx = jnp.concatenate(
        [ctx[h * TB:(h + 1) * TB] for h in range(H)], axis=-1)       # (TB, S, D)
    ctx = ctx.reshape(M, D).astype(jnp.bfloat16)
    attn = jnp.dot(ctx, wo_ref[...], preferred_element_type=jnp.float32) + bo_ref[...]

    x1 = x + attn     # residual (dropout = identity, inference semantics)

    # ---- pre-LN position-wise feed forward (1x1 Conv1d pair == two Linears) ----
    ln2 = _layer_norm(x1, n2a_ref[...], n2b_ref[...]).astype(jnp.bfloat16)
    hid = jnp.maximum(
        jnp.dot(ln2, w1_ref[...], preferred_element_type=jnp.float32) + b1_ref[...],
        0.0).astype(jnp.bfloat16)
    ff = jnp.dot(hid, w2_ref[...], preferred_element_type=jnp.float32) + b2_ref[...]
    x2 = x1 + ff

    if fuse_cls:
        # Final LayerNorm + ClsHead fused: no second pallas_call re-DMAing the
        # activations just to read token 0 of each example.
        x0 = x2.reshape(TB, S, D)[:, 0, :]                # (TB, D): token 0 rows
        ln = _layer_norm(x0, na_ref[...], nb_ref[...]).astype(jnp.bfloat16)
        h1 = jnp.tanh(jnp.dot(ln, cw1_ref[...],
                              preferred_element_type=jnp.float32) + cb1_ref[...])
        logits = (jnp.dot(h1.astype(jnp.bfloat16), cw2_ref[...],
                          preferred_element_type=jnp.float32) + cb2_ref[...])
        out_ref[...] = logits                             # block (TB, C) f32
    else:
        out_ref[...] = x2.astype(jnp.bfloat16)            # block (TB*S, D) bf16


def _pick_block_batch(B, S):
    # Target ~128 matmul rows (one full MXU pass) per grid step and cut grid-step
    # overhead on the single-TC v5e/v6e.  NOTE(v7x): with 2 TensorCores one may cap
    # this at B//2 so the "parallel" batch axis still feeds both cores.
    tb = max(1, min(B, max(1, 128 // S)))
    while B % tb:
        tb -= 1
    return tb


def run_encoder_layer(x2d, mask_bias, layer_params, n_heads, seq_len, block_batch,
                      cls_params=None):
    """One encoder layer on a flattened (B*S, D) bf16 activation slab.
    If cls_params is provided the final norm + cls head are fused and the call
    returns f32 logits of shape (B, C); otherwise it returns bf16 (B*S, D)."""
    BS, D = x2d.shape
    B = BS // seq_len
    TB = block_batch
    grid_b = B // TB
    fuse_cls = cls_params is not None
    params = list(layer_params) + (list(cls_params) if fuse_cls else [])

    def const_spec(p):
        # Constant-index weight blocks.  TODO(perf, v7x): at production D/d_ff mark
        # these pipeline_mode=pl.Buffered(1) (single-buffer) and set an explicit
        # pltpu.CompilerParams(vmem_limit_bytes=...); negligible at these toy sizes.
        zeros = (0,) * p.ndim
        return pl.BlockSpec(p.shape, lambda i, _z=zeros: _z)

    weight_specs = [const_spec(p) for p in params]

    if fuse_cls:
        C = cls_params[4].shape[1]          # cw2 is [in, out] = [D, C]
        out_shape = jax.ShapeDtypeStruct((B, C), jnp.float32)
        out_spec = pl.BlockSpec((TB, C), lambda i: (i, 0))
    else:
        out_shape = jax.ShapeDtypeStruct((BS, D), jnp.bfloat16)
        out_spec = pl.BlockSpec((TB * seq_len, D), lambda i: (i, 0))

    kernel = functools.partial(encoder_layer_kernel, n_heads=n_heads,
                               seq_len=seq_len, block_batch=TB, fuse_cls=fuse_cls)
    return pl.pallas_call(
        kernel,
        out_shape=out_shape,
        grid=(grid_b,),
        in_specs=[pl.BlockSpec((TB * seq_len, D), lambda i: (i, 0)),
                  pl.BlockSpec((TB, 1, seq_len), lambda i: (i, 0, 0))] + weight_specs,
        out_specs=out_spec,
        compiler_params=pltpu.CompilerParams(dimension_semantics=("parallel",)),
    )(x2d, mask_bias, *params)


# ---------------------------------------------------------------------------
# Parameter construction (deterministic; xavier-uniform for dim>1 like the ctor).
# Matmul weights stored in kernel layout [in, out], bf16, QKV fused, scale folded.
# ---------------------------------------------------------------------------
def xavier_uniform(key, shape):
    fan_out, fan_in = shape[0], shape[1]
    bound = math.sqrt(6.0 / (fan_in + fan_out))
    return jax.random.uniform(key, shape, jnp.float32, -bound, bound)


def small_uniform(key, shape, scale=0.05):
    return jax.random.uniform(key, shape, jnp.float32, -scale, scale)


def positional_encoding(S, D):
    pos = jnp.arange(S, dtype=jnp.float32)[:, None]
    div = jnp.exp(jnp.arange(0, D, 2, dtype=jnp.float32) * -(math.log(10000.0) / D))
    pe = jnp.zeros((S, D), jnp.float32)
    pe = pe.at[:, 0::2].set(jnp.sin(pos * div))
    pe = pe.at[:, 1::2].set(jnp.cos(pos * div))
    return pe


def make_encoder_layer_params(key, d_model, d_ff, n_heads):
    ks = jax.random.split(key, 12)
    D, F = d_model, d_ff
    scale = 1.0 / math.sqrt(D // n_heads)
    wq = xavier_uniform(ks[0], (D, D)); bq = small_uniform(ks[1], (1, D))
    wk = xavier_uniform(ks[2], (D, D)); bk = small_uniform(ks[3], (1, D))
    wv = xavier_uniform(ks[4], (D, D)); bv = small_uniform(ks[5], (1, D))
    wo = xavier_uniform(ks[6], (D, D)); bo = small_uniform(ks[7], (1, D))
    w1 = xavier_uniform(ks[8], (F, D)); b1 = small_uniform(ks[9], (1, F))
    w2 = xavier_uniform(ks[10], (D, F)); b2 = small_uniform(ks[11], (1, D))
    # PyTorch [out, in] -> kernel [in, out]; Q/K/V fused along out; 1/sqrt(d_k) folded
    # into the Q columns and Q bias.
    wqkv = jnp.concatenate([wq.T * scale, wk.T, wv.T], axis=1).astype(jnp.bfloat16)
    bqkv = jnp.concatenate([bq * scale, bk, bv], axis=1)          # (1, 3D) f32
    return [
        jnp.ones((1, D), jnp.float32), jnp.zeros((1, D), jnp.float32),   # n1.a2, n1.b2
        wqkv, bqkv,
        jnp.asarray(wo.T, jnp.bfloat16), bo,                             # Wo, bo
        jnp.ones((1, D), jnp.float32), jnp.zeros((1, D), jnp.float32),   # n2.a2, n2.b2
        jnp.asarray(w1.T, jnp.bfloat16), b1,                             # FFN w1 [D,F]
        jnp.asarray(w2.T, jnp.bfloat16), b2,                             # FFN w2 [F,D]
    ]


def transformer_cls_forward(src, src_mask, params, *, n_heads):
    emb_table, pe, layers, cls_params = params
    B, S = src.shape
    D = emb_table.shape[1]
    # Embedding lookup + positional encoding (gather: plain JAX glue), carried bf16.
    x = emb_table[src] * math.sqrt(D) + pe[None, :S, :]          # (B, S, D) f32
    x2d = x.reshape(B * S, D).astype(jnp.bfloat16)               # flat bf16 slab
    # Host-precomputed additive mask bias: 0 where keep, -1e9 where masked.
    mask_bias = (src_mask.astype(jnp.float32) - 1.0) * 1.0e9     # (B, 1, S)
    tb = _pick_block_batch(B, S)
    # All layers except the last: plain encoder-layer kernel (bf16 in/out).
    for layer_params in layers[:-1]:
        x2d = run_encoder_layer(x2d, mask_bias, layer_params, n_heads, S, tb)
    # Last layer: encoder layer + final norm + cls head fused in one kernel.
    logits = run_encoder_layer(x2d, mask_bias, layers[-1], n_heads, S, tb,
                               cls_params=cls_params)
    return logits                                                # (B, n_classes)


# ---------------------------------------------------------------------------
if __name__ == "__main__":
    B, S = 2, 8
    vocab, n_heads, d_model, d_ff, n_classes, n_layer = 50, 4, 32, 64, 4, 1

    root = jax.random.PRNGKey(0)
    k_src, k_emb, k_layers, k_cls1, k_cls1b, k_cls2, k_cls2b = jax.random.split(root, 7)

    src = jax.random.randint(k_src, (B, S), 0, vocab, dtype=jnp.int32)
    src_mask = jnp.ones((B, 1, S), jnp.int32)
    src_mask = src_mask.at[1, 0, 6:].set(0)          # pad last two positions of sample 1

    layer_keys = jax.random.split(k_layers, n_layer)
    layers = [make_encoder_layer_params(k, d_model, d_ff, n_heads) for k in layer_keys]

    cls_params = [
        jnp.ones((1, d_model), jnp.float32),                                   # final norm a2
        jnp.zeros((1, d_model), jnp.float32),                                  # final norm b2
        jnp.asarray(xavier_uniform(k_cls1, (d_model, d_model)).T, jnp.bfloat16),  # cls W1 [D,D]
        small_uniform(k_cls1b, (1, d_model)),                                  # cls b1
        jnp.asarray(xavier_uniform(k_cls2, (n_classes, d_model)).T, jnp.bfloat16),  # cls W2 [D,C]
        small_uniform(k_cls2b, (1, n_classes)),                                # cls b2
    ]

    params = (
        xavier_uniform(k_emb, (vocab, d_model)),     # embedding table
        positional_encoding(S, d_model),             # pe buffer
        layers,
        cls_params,
    )

    fwd = jax.jit(functools.partial(transformer_cls_forward, n_heads=n_heads))
    out = jax.block_until_ready(fwd(src, src_mask, params))
    assert out.shape == (B, n_classes) and out.dtype == jnp.float32
    print("KERNEL_OK")
</pallas_src>

<mosaic_0001>
module attributes {stable_mosaic.version = 11 : i64} {
  func.func @encoder_layer_kernel(%arg0: i32, %arg1: memref<16x32xbf16, #tpu.memory_space<vmem>>, %arg2: memref<2x1x8xf32, #tpu.memory_space<vmem>>, %arg3: memref<1x32xf32, #tpu.memory_space<vmem>>, %arg4: memref<1x32xf32, #tpu.memory_space<vmem>>, %arg5: memref<32x96xbf16, #tpu.memory_space<vmem>>, %arg6: memref<1x96xf32, #tpu.memory_space<vmem>>, %arg7: memref<32x32xbf16, #tpu.memory_space<vmem>>, %arg8: memref<1x32xf32, #tpu.memory_space<vmem>>, %arg9: memref<1x32xf32, #tpu.memory_space<vmem>>, %arg10: memref<1x32xf32, #tpu.memory_space<vmem>>, %arg11: memref<32x64xbf16, #tpu.memory_space<vmem>>, %arg12: memref<1x64xf32, #tpu.memory_space<vmem>>, %arg13: memref<64x32xbf16, #tpu.memory_space<vmem>>, %arg14: memref<1x32xf32, #tpu.memory_space<vmem>>, %arg15: memref<1x32xf32, #tpu.memory_space<vmem>>, %arg16: memref<1x32xf32, #tpu.memory_space<vmem>>, %arg17: memref<32x32xbf16, #tpu.memory_space<vmem>>, %arg18: memref<1x32xf32, #tpu.memory_space<vmem>>, %arg19: memref<32x4xbf16, #tpu.memory_space<vmem>>, %arg20: memref<1x4xf32, #tpu.memory_space<vmem>>, %arg21: memref<2x4xf32, #tpu.memory_space<vmem>>) attributes {dimension_semantics = [#tpu.dimension_semantics<parallel>], iteration_bounds = array<i64: 1>, scalar_prefetch = 0 : i64, scratch_operands = 0 : i64, tpu.core_type = #tpu.core_type<tc>, window_params = [{transform_indices = @transform_0, window_bounds = array<i64: 16, 32>}, {transform_indices = @transform_1, window_bounds = array<i64: 2, 1, 8>}, {pipeline_mode = #tpu.pipeline_mode<synchronous>, transform_indices = @transform_2, window_bounds = array<i64: 1, 32>}, {pipeline_mode = #tpu.pipeline_mode<synchronous>, transform_indices = @transform_3, window_bounds = array<i64: 1, 32>}, {pipeline_mode = #tpu.pipeline_mode<synchronous>, transform_indices = @transform_4, window_bounds = array<i64: 32, 96>}, {pipeline_mode = #tpu.pipeline_mode<synchronous>, transform_indices = @transform_5, window_bounds = array<i64: 1, 96>}, {pipeline_mode = #tpu.pipeline_mode<synchronous>, transform_indices = @transform_6, window_bounds = array<i64: 32, 32>}, {pipeline_mode = #tpu.pipeline_mode<synchronous>, transform_indices = @transform_7, window_bounds = array<i64: 1, 32>}, {pipeline_mode = #tpu.pipeline_mode<synchronous>, transform_indices = @transform_8, window_bounds = array<i64: 1, 32>}, {pipeline_mode = #tpu.pipeline_mode<synchronous>, transform_indices = @transform_9, window_bounds = array<i64: 1, 32>}, {pipeline_mode = #tpu.pipeline_mode<synchronous>, transform_indices = @transform_10, window_bounds = array<i64: 32, 64>}, {pipeline_mode = #tpu.pipeline_mode<synchronous>, transform_indices = @transform_11, window_bounds = array<i64: 1, 64>}, {pipeline_mode = #tpu.pipeline_mode<synchronous>, transform_indices = @transform_12, window_bounds = array<i64: 64, 32>}, {pipeline_mode = #tpu.pipeline_mode<synchronous>, transform_indices = @transform_13, window_bounds = array<i64: 1, 32>}, {pipeline_mode = #tpu.pipeline_mode<synchronous>, transform_indices = @transform_14, window_bounds = array<i64: 1, 32>}, {pipeline_mode = #tpu.pipeline_mode<synchronous>, transform_indices = @transform_15, window_bounds = array<i64: 1, 32>}, {pipeline_mode = #tpu.pipeline_mode<synchronous>, transform_indices = @transform_16, window_bounds = array<i64: 32, 32>}, {pipeline_mode = #tpu.pipeline_mode<synchronous>, transform_indices = @transform_17, window_bounds = array<i64: 1, 32>}, {pipeline_mode = #tpu.pipeline_mode<synchronous>, transform_indices = @transform_18, window_bounds = array<i64: 32, 4>}, {pipeline_mode = #tpu.pipeline_mode<synchronous>, transform_indices = @transform_19, window_bounds = array<i64: 1, 4>}, {transform_indices = @transform_20, window_bounds = array<i64: 2, 4>}]} {
    %c0 = arith.constant 0 : index
    %c0_0 = arith.constant 0 : index
    %0 = vector.load %arg1[%c0, %c0_0] : memref<16x32xbf16, #tpu.memory_space<vmem>>, vector<16x32xbf16>
    %1 = arith.extf %0 : vector<16x32xbf16> to vector<16x32xf32>
    %c0_1 = arith.constant 0 : index
    %c0_2 = arith.constant 0 : index
    %2 = vector.load %arg3[%c0_1, %c0_2] : memref<1x32xf32, #tpu.memory_space<vmem>>, vector<1x32xf32>
    %c0_3 = arith.constant 0 : index
    %c0_4 = arith.constant 0 : index
    %3 = vector.load %arg4[%c0_3, %c0_4] : memref<1x32xf32, #tpu.memory_space<vmem>>, vector<1x32xf32>
    %cst = arith.constant dense<0.000000e+00> : vector<16xf32>
    %4 = vector.multi_reduction <add>, %1, %cst [1] : vector<16x32xf32> to vector<16xf32>
    %5 = vector.shape_cast %4 : vector<16xf32> to vector<16x1xf32>
    %6 = arith.mulf %1, %1 : vector<16x32xf32>
    %cst_5 = arith.constant dense<0.000000e+00> : vector<16xf32>
    %7 = vector.multi_reduction <add>, %6, %cst_5 [1] : vector<16x32xf32> to vector<16xf32>
    %8 = vector.shape_cast %7 : vector<16xf32> to vector<16x1xf32>
    %cst_6 = arith.constant 3.125000e-02 : f32
    %9 = vector.broadcast %cst_6 : f32 to vector<16x1xf32>
    %10 = arith.mulf %5, %9 : vector<16x1xf32>
    %cst_7 = arith.constant 3.200000e+01 : f32
    %11 = vector.broadcast %cst_7 : f32 to vector<16x1xf32>
    %12 = arith.mulf %11, %10 : vector<16x1xf32>
    %13 = arith.mulf %12, %10 : vector<16x1xf32>
    %14 = arith.subf %8, %13 : vector<16x1xf32>
    %cst_8 = arith.constant 0.0322580636 : f32
    %15 = vector.broadcast %cst_8 : f32 to vector<16x1xf32>
    %16 = arith.mulf %14, %15 : vector<16x1xf32>
    %cst_9 = arith.constant 0.000000e+00 : f32
    %17 = vector.broadcast %cst_9 : f32 to vector<16x1xf32>
    %18 = arith.maximumf %16, %17 : vector<16x1xf32>
    %19 = math.sqrt %18 : vector<16x1xf32>
    %cst_10 = arith.constant 9.99999997E-7 : f32
    %20 = vector.broadcast %cst_10 : f32 to vector<16x1xf32>
    %21 = arith.addf %19, %20 : vector<16x1xf32>
    %22 = tpu.reciprocal %21 {approx = true} : vector<16x1xf32> -> vector<16x1xf32>
    %23 = vector.broadcast %10 : vector<16x1xf32> to vector<16x32xf32>
    %24 = arith.subf %1, %23 : vector<16x32xf32>
    %25 = vector.broadcast %2 : vector<1x32xf32> to vector<16x32xf32>
    %26 = arith.mulf %25, %24 : vector<16x32xf32>
    %27 = vector.broadcast %22 : vector<16x1xf32> to vector<16x32xf32>
    %28 = arith.mulf %26, %27 : vector<16x32xf32>
    %29 = vector.broadcast %3 : vector<1x32xf32> to vector<16x32xf32>
    %30 = arith.addf %28, %29 : vector<16x32xf32>
    %31 = arith.truncf %30 : vector<16x32xf32> to vector<16x32xbf16>
    %c0_11 = arith.constant 0 : index
    %c0_12 = arith.constant 0 : index
    %32 = vector.load %arg5[%c0_11, %c0_12] : memref<32x96xbf16, #tpu.memory_space<vmem>>, vector<32x96xbf16>
    %cst_13 = arith.constant dense<0.000000e+00> : vector<16x96xf32>
    %33 = tpu.matmul %31, %32, %cst_13 {dimension_numbers = #tpu.dot_dimension_numbers<[1], [0], [0], [1], [0, 0, 1, 1], [], []>} : vector<16x32xbf16>, vector<32x96xbf16>, vector<16x96xf32> -> vector<16x96xf32>
    %c0_14 = arith.constant 0 : index
    %c0_15 = arith.constant 0 : index
    %34 = vector.load %arg6[%c0_14, %c0_15] : memref<1x96xf32, #tpu.memory_space<vmem>>, vector<1x96xf32>
    %35 = vector.broadcast %34 : vector<1x96xf32> to vector<16x96xf32>
    %36 = arith.addf %33, %35 : vector<16x96xf32>
    %37 = arith.truncf %36 : vector<16x96xf32> to vector<16x96xbf16>
    %38 = vector.extract_strided_slice %37 {offsets = [0, 0], sizes = [16, 32], strides = [1, 1]} : vector<16x96xbf16> to vector<16x32xbf16>
    %39 = vector.shape_cast %38 : vector<16x32xbf16> to vector<2x8x32xbf16>
    %40 = vector.extract_strided_slice %39 {offsets = [0, 0, 0], sizes = [2, 8, 8], strides = [1, 1, 1]} : vector<2x8x32xbf16> to vector<2x8x8xbf16>
    %41 = vector.extract_strided_slice %39 {offsets = [0, 0, 8], sizes = [2, 8, 8], strides = [1, 1, 1]} : vector<2x8x32xbf16> to vector<2x8x8xbf16>
    %42 = vector.extract_strided_slice %39 {offsets = [0, 0, 16], sizes = [2, 8, 8], strides = [1, 1, 1]} : vector<2x8x32xbf16> to vector<2x8x8xbf16>
    %43 = vector.extract_strided_slice %39 {offsets = [0, 0, 24], sizes = [2, 8, 8], strides = [1, 1, 1]} : vector<2x8x32xbf16> to vector<2x8x8xbf16>
    %44 = tpu.concatenate %40, %41, %42, %43 in 0 : vector<2x8x8xbf16>, vector<2x8x8xbf16>, vector<2x8x8xbf16>, vector<2x8x8xbf16> -> vector<8x8x8xbf16>
    %45 = vector.extract_strided_slice %37 {offsets = [0, 32], sizes = [16, 32], strides = [1, 1]} : vector<16x96xbf16> to vector<16x32xbf16>
    %46 = vector.shape_cast %45 : vector<16x32xbf16> to vector<2x8x32xbf16>
    %47 = vector.extract_strided_slice %46 {offsets = [0, 0, 0], sizes = [2, 8, 8], strides = [1, 1, 1]} : vector<2x8x32xbf16> to vector<2x8x8xbf16>
    %48 = vector.extract_strided_slice %46 {offsets = [0, 0, 8], sizes = [2, 8, 8], strides = [1, 1, 1]} : vector<2x8x32xbf16> to vector<2x8x8xbf16>
    %49 = vector.extract_strided_slice %46 {offsets = [0, 0, 16], sizes = [2, 8, 8], strides = [1, 1, 1]} : vector<2x8x32xbf16> to vector<2x8x8xbf16>
    %50 = vector.extract_strided_slice %46 {offsets = [0, 0, 24], sizes = [2, 8, 8], strides = [1, 1, 1]} : vector<2x8x32xbf16> to vector<2x8x8xbf16>
    %51 = tpu.concatenate %47, %48, %49, %50 in 0 : vector<2x8x8xbf16>, vector<2x8x8xbf16>, vector<2x8x8xbf16>, vector<2x8x8xbf16> -> vector<8x8x8xbf16>
    %52 = vector.extract_strided_slice %37 {offsets = [0, 64], sizes = [16, 32], strides = [1, 1]} : vector<16x96xbf16> to vector<16x32xbf16>
    %53 = vector.shape_cast %52 : vector<16x32xbf16> to vector<2x8x32xbf16>
    %54 = vector.extract_strided_slice %53 {offsets = [0, 0, 0], sizes = [2, 8, 8], strides = [1, 1, 1]} : vector<2x8x32xbf16> to vector<2x8x8xbf16>
    %55 = vector.extract_strided_slice %53 {offsets = [0, 0, 8], sizes = [2, 8, 8], strides = [1, 1, 1]} : vector<2x8x32xbf16> to vector<2x8x8xbf16>
    %56 = vector.extract_strided_slice %53 {offsets = [0, 0, 16], sizes = [2, 8, 8], strides = [1, 1, 1]} : vector<2x8x32xbf16> to vector<2x8x8xbf16>
    %57 = vector.extract_strided_slice %53 {offsets = [0, 0, 24], sizes = [2, 8, 8], strides = [1, 1, 1]} : vector<2x8x32xbf16> to vector<2x8x8xbf16>
    %58 = tpu.concatenate %54, %55, %56, %57 in 0 : vector<2x8x8xbf16>, vector<2x8x8xbf16>, vector<2x8x8xbf16>, vector<2x8x8xbf16> -> vector<8x8x8xbf16>
    "tpu.trace_start"() <{level = 10 : i32, message = "gqd,gkd->gqk"}> : () -> ()
    %cst_16 = arith.constant dense<0.000000e+00> : vector<8x8x8xf32>
    %59 = tpu.matmul %44, %51, %cst_16 {dimension_numbers = #tpu.dot_dimension_numbers<[2], [2], [1], [1], [0, 0, 0, 1, 1, 1], [0], [0]>} : vector<8x8x8xbf16>, vector<8x8x8xbf16>, vector<8x8x8xf32> -> vector<8x8x8xf32>
    "tpu.trace_stop"() : () -> ()
    %c0_17 = arith.constant 0 : index
    %c0_18 = arith.constant 0 : index
    %c0_19 = arith.constant 0 : index
    %60 = vector.load %arg2[%c0_17, %c0_18, %c0_19] : memref<2x1x8xf32, #tpu.memory_space<vmem>>, vector<2x1x8xf32>
    %61 = tpu.concatenate %60, %60, %60, %60 in 0 : vector<2x1x8xf32>, vector<2x1x8xf32>, vector<2x1x8xf32>, vector<2x1x8xf32> -> vector<8x1x8xf32>
    %62 = vector.broadcast %61 : vector<8x1x8xf32> to vector<8x8x8xf32>
    %63 = arith.addf %59, %62 : vector<8x8x8xf32>
    %cst_20 = arith.constant dense<0xFF800000> : vector<8x8xf32>
    %64 = vector.multi_reduction <maximumf>, %63, %cst_20 [2] : vector<8x8x8xf32> to vector<8x8xf32>
    %65 = vector.shape_cast %64 : vector<8x8xf32> to vector<8x8x1xf32>
    %66 = vector.broadcast %65 : vector<8x8x1xf32> to vector<8x8x8xf32>
    %67 = arith.subf %63, %66 : vector<8x8x8xf32>
    %68 = math.exp %67 : vector<8x8x8xf32>
    %cst_21 = arith.constant dense<0.000000e+00> : vector<8x8xf32>
    %69 = vector.multi_reduction <add>, %68, %cst_21 [2] : vector<8x8x8xf32> to vector<8x8xf32>
    %70 = vector.shape_cast %69 : vector<8x8xf32> to vector<8x8x1xf32>
    %71 = tpu.reciprocal %70 {approx = true} : vector<8x8x1xf32> -> vector<8x8x1xf32>
    %72 = vector.broadcast %71 : vector<8x8x1xf32> to vector<8x8x8xf32>
    %73 = arith.mulf %68, %72 : vector<8x8x8xf32>
    %74 = arith.truncf %73 : vector<8x8x8xf32> to vector<8x8x8xbf16>
    "tpu.trace_start"() <{level = 10 : i32, message = "gqk,gkd->gqd"}> : () -> ()
    %cst_22 = arith.constant dense<0.000000e+00> : vector<8x8x8xf32>
    %75 = tpu.matmul %74, %58, %cst_22 {dimension_numbers = #tpu.dot_dimension_numbers<[2], [1], [1], [2], [0, 0, 0, 1, 1, 2], [0], [0]>} : vector<8x8x8xbf16>, vector<8x8x8xbf16>, vector<8x8x8xf32> -> vector<8x8x8xf32>
    "tpu.trace_stop"() : () -> ()
    %76 = vector.extract_strided_slice %75 {offsets = [0, 0, 0], sizes = [2, 8, 8], strides = [1, 1, 1]} : vector<8x8x8xf32> to vector<2x8x8xf32>
    %77 = vector.extract_strided_slice %75 {offsets = [2, 0, 0], sizes = [2, 8, 8], strides = [1, 1, 1]} : vector<8x8x8xf32> to vector<2x8x8xf32>
    %78 = vector.extract_strided_slice %75 {offsets = [4, 0, 0], sizes = [2, 8, 8], strides = [1, 1, 1]} : vector<8x8x8xf32> to vector<2x8x8xf32>
    %79 = vector.extract_strided_slice %75 {offsets = [6, 0, 0], sizes = [2, 8, 8], strides = [1, 1, 1]} : vector<8x8x8xf32> to vector<2x8x8xf32>
    %80 = tpu.concatenate %76, %77, %78, %79 in 2 : vector<2x8x8xf32>, vector<2x8x8xf32>, vector<2x8x8xf32>, vector<2x8x8xf32> -> vector<2x8x32xf32>
    %81 = vector.shape_cast %80 : vector<2x8x32xf32> to vector<16x32xf32>
    %82 = arith.truncf %81 : vector<16x32xf32> to vector<16x32xbf16>
    %c0_23 = arith.constant 0 : index
    %c0_24 = arith.constant 0 : index
    %83 = vector.load %arg7[%c0_23, %c0_24] : memref<32x32xbf16, #tpu.memory_space<vmem>>, vector<32x32xbf16>
    %cst_25 = arith.constant dense<0.000000e+00> : vector<16x32xf32>
    %84 = tpu.matmul %82, %83, %cst_25 {dimension_numbers = #tpu.dot_dimension_numbers<[1], [0], [0], [1], [0, 0, 1, 1], [], []>} : vector<16x32xbf16>, vector<32x32xbf16>, vector<16x32xf32> -> vector<16x32xf32>
    %c0_26 = arith.constant 0 : index
    %c0_27 = arith.constant 0 : index
    %85 = vector.load %arg8[%c0_26, %c0_27] : memref<1x32xf32, #tpu.memory_space<vmem>>, vector<1x32xf32>
    %86 = vector.broadcast %85 : vector<1x32xf32> to vector<16x32xf32>
    %87 = arith.addf %84, %86 : vector<16x32xf32>
    %88 = arith.addf %1, %87 : vector<16x32xf32>
    %c0_28 = arith.constant 0 : index
    %c0_29 = arith.constant 0 : index
    %89 = vector.load %arg9[%c0_28, %c0_29] : memref<1x32xf32, #tpu.memory_space<vmem>>, vector<1x32xf32>
    %c0_30 = arith.constant 0 : index
    %c0_31 = arith.constant 0 : index
    %90 = vector.load %arg10[%c0_30, %c0_31] : memref<1x32xf32, #tpu.memory_space<vmem>>, vector<1x32xf32>
    %cst_32 = arith.constant dense<0.000000e+00> : vector<16xf32>
    %91 = vector.multi_reduction <add>, %88, %cst_32 [1] : vector<16x32xf32> to vector<16xf32>
    %92 = vector.shape_cast %91 : vector<16xf32> to vector<16x1xf32>
    %93 = arith.mulf %88, %88 : vector<16x32xf32>
    %cst_33 = arith.constant dense<0.000000e+00> : vector<16xf32>
    %94 = vector.multi_reduction <add>, %93, %cst_33 [1] : vector<16x32xf32> to vector<16xf32>
    %95 = vector.shape_cast %94 : vector<16xf32> to vector<16x1xf32>
    %cst_34 = arith.constant 3.125000e-02 : f32
    %96 = vector.broadcast %cst_34 : f32 to vector<16x1xf32>
    %97 = arith.mulf %92, %96 : vector<16x1xf32>
    %cst_35 = arith.constant 3.200000e+01 : f32
    %98 = vector.broadcast %cst_35 : f32 to vector<16x1xf32>
    %99 = arith.mulf %98, %97 : vector<16x1xf32>
    %100 = arith.mulf %99, %97 : vector<16x1xf32>
    %101 = arith.subf %95, %100 : vector<16x1xf32>
    %cst_36 = arith.constant 0.0322580636 : f32
    %102 = vector.broadcast %cst_36 : f32 to vector<16x1xf32>
    %103 = arith.mulf %101, %102 : vector<16x1xf32>
    %cst_37 = arith.constant 0.000000e+00 : f32
    %104 = vector.broadcast %cst_37 : f32 to vector<16x1xf32>
    %105 = arith.maximumf %103, %104 : vector<16x1xf32>
    %106 = math.sqrt %105 : vector<16x1xf32>
    %cst_38 = arith.constant 9.99999997E-7 : f32
    %107 = vector.broadcast %cst_38 : f32 to vector<16x1xf32>
    %108 = arith.addf %106, %107 : vector<16x1xf32>
    %109 = tpu.reciprocal %108 {approx = true} : vector<16x1xf32> -> vector<16x1xf32>
    %110 = vector.broadcast %97 : vector<16x1xf32> to vector<16x32xf32>
    %111 = arith.subf %88, %110 : vector<16x32xf32>
    %112 = vector.broadcast %89 : vector<1x32xf32> to vector<16x32xf32>
    %113 = arith.mulf %112, %111 : vector<16x32xf32>
    %114 = vector.broadcast %109 : vector<16x1xf32> to vector<16x32xf32>
    %115 = arith.mulf %113, %114 : vector<16x32xf32>
    %116 = vector.broadcast %90 : vector<1x32xf32> to vector<16x32xf32>
    %117 = arith.addf %115, %116 : vector<16x32xf32>
    %118 = arith.truncf %117 : vector<16x32xf32> to vector<16x32xbf16>
    %c0_39 = arith.constant 0 : index
    %c0_40 = arith.constant 0 : index
    %119 = vector.load %arg11[%c0_39, %c0_40] : memref<32x64xbf16, #tpu.memory_space<vmem>>, vector<32x64xbf16>
    %cst_41 = arith.constant dense<0.000000e+00> : vector<16x64xf32>
    %120 = tpu.matmul %118, %119, %cst_41 {dimension_numbers = #tpu.dot_dimension_numbers<[1], [0], [0], [1], [0, 0, 1, 1], [], []>} : vector<16x32xbf16>, vector<32x64xbf16>, vector<16x64xf32> -> vector<16x64xf32>
    %c0_42 = arith.constant 0 : index
    %c0_43 = arith.constant 0 : index
    %121 = vector.load %arg12[%c0_42, %c0_43] : memref<1x64xf32, #tpu.memory_space<vmem>>, vector<1x64xf32>
    %122 = vector.broadcast %121 : vector<1x64xf32> to vector<16x64xf32>
    %123 = arith.addf %120, %122 : vector<16x64xf32>
    %cst_44 = arith.constant 0.000000e+00 : f32
    %124 = vector.broadcast %cst_44 : f32 to vector<16x64xf32>
    %125 = arith.maximumf %123, %124 : vector<16x64xf32>
    %126 = arith.truncf %125 : vector<16x64xf32> to vector<16x64xbf16>
    %c0_45 = arith.constant 0 : index
    %c0_46 = arith.constant 0 : index
    %127 = vector.load %arg13[%c0_45, %c0_46] : memref<64x32xbf16, #tpu.memory_space<vmem>>, vector<64x32xbf16>
    %cst_47 = arith.constant dense<0.000000e+00> : vector<16x32xf32>
    %128 = tpu.matmul %126, %127, %cst_47 {dimension_numbers = #tpu.dot_dimension_numbers<[1], [0], [0], [1], [0, 0, 1, 1], [], []>} : vector<16x64xbf16>, vector<64x32xbf16>, vector<16x32xf32> -> vector<16x32xf32>
    %c0_48 = arith.constant 0 : index
    %c0_49 = arith.constant 0 : index
    %129 = vector.load %arg14[%c0_48, %c0_49] : memref<1x32xf32, #tpu.memory_space<vmem>>, vector<1x32xf32>
    %130 = vector.broadcast %129 : vector<1x32xf32> to vector<16x32xf32>
    %131 = arith.addf %128, %130 : vector<16x32xf32>
    %132 = arith.addf %88, %131 : vector<16x32xf32>
    %133 = vector.shape_cast %132 : vector<16x32xf32> to vector<2x8x32xf32>
    %134 = vector.extract_strided_slice %133 {offsets = [0, 0, 0], sizes = [2, 1, 32], strides = [1, 1, 1]} : vector<2x8x32xf32> to vector<2x1x32xf32>
    %135 = vector.shape_cast %134 : vector<2x1x32xf32> to vector<2x32xf32>
    %c0_50 = arith.constant 0 : index
    %c0_51 = arith.constant 0 : index
    %136 = vector.load %arg15[%c0_50, %c0_51] : memref<1x32xf32, #tpu.memory_space<vmem>>, vector<1x32xf32>
    %c0_52 = arith.constant 0 : index
    %c0_53 = arith.constant 0 : index
    %137 = vector.load %arg16[%c0_52, %c0_53] : memref<1x32xf32, #tpu.memory_space<vmem>>, vector<1x32xf32>
    %cst_54 = arith.constant dense<0.000000e+00> : vector<2xf32>
    %138 = vector.multi_reduction <add>, %135, %cst_54 [1] : vector<2x32xf32> to vector<2xf32>
    %139 = vector.shape_cast %138 : vector<2xf32> to vector<2x1xf32>
    %140 = arith.mulf %135, %135 : vector<2x32xf32>
    %cst_55 = arith.constant dense<0.000000e+00> : vector<2xf32>
    %141 = vector.multi_reduction <add>, %140, %cst_55 [1] : vector<2x32xf32> to vector<2xf32>
    %142 = vector.shape_cast %141 : vector<2xf32> to vector<2x1xf32>
    %cst_56 = arith.constant 3.125000e-02 : f32
    %143 = vector.broadcast %cst_56 : f32 to vector<2x1xf32>
    %144 = arith.mulf %139, %143 : vector<2x1xf32>
    %cst_57 = arith.constant 3.200000e+01 : f32
    %145 = vector.broadcast %cst_57 : f32 to vector<2x1xf32>
    %146 = arith.mulf %145, %144 : vector<2x1xf32>
    %147 = arith.mulf %146, %144 : vector<2x1xf32>
    %148 = arith.subf %142, %147 : vector<2x1xf32>
    %cst_58 = arith.constant 0.0322580636 : f32
    %149 = vector.broadcast %cst_58 : f32 to vector<2x1xf32>
    %150 = arith.mulf %148, %149 : vector<2x1xf32>
    %cst_59 = arith.constant 0.000000e+00 : f32
    %151 = vector.broadcast %cst_59 : f32 to vector<2x1xf32>
    %152 = arith.maximumf %150, %151 : vector<2x1xf32>
    %153 = math.sqrt %152 : vector<2x1xf32>
    %cst_60 = arith.constant 9.99999997E-7 : f32
    %154 = vector.broadcast %cst_60 : f32 to vector<2x1xf32>
    %155 = arith.addf %153, %154 : vector<2x1xf32>
    %156 = tpu.reciprocal %155 {approx = true} : vector<2x1xf32> -> vector<2x1xf32>
    %157 = vector.broadcast %144 : vector<2x1xf32> to vector<2x32xf32>
    %158 = arith.subf %135, %157 : vector<2x32xf32>
    %159 = vector.broadcast %136 : vector<1x32xf32> to vector<2x32xf32>
    %160 = arith.mulf %159, %158 : vector<2x32xf32>
    %161 = vector.broadcast %156 : vector<2x1xf32> to vector<2x32xf32>
    %162 = arith.mulf %160, %161 : vector<2x32xf32>
    %163 = vector.broadcast %137 : vector<1x32xf32> to vector<2x32xf32>
    %164 = arith.addf %162, %163 : vector<2x32xf32>
    %165 = arith.truncf %164 : vector<2x32xf32> to vector<2x32xbf16>
    %c0_61 = arith.constant 0 : index
    %c0_62 = arith.constant 0 : index
    %166 = vector.load %arg17[%c0_61, %c0_62] : memref<32x32xbf16, #tpu.memory_space<vmem>>, vector<32x32xbf16>
    %cst_63 = arith.constant dense<0.000000e+00> : vector<2x32xf32>
    %167 = tpu.matmul %165, %166, %cst_63 {dimension_numbers = #tpu.dot_dimension_numbers<[1], [0], [0], [1], [0, 0, 1, 1], [], []>} : vector<2x32xbf16>, vector<32x32xbf16>, vector<2x32xf32> -> vector<2x32xf32>
    %c0_64 = arith.constant 0 : index
    %c0_65 = arith.constant 0 : index
    %168 = vector.load %arg18[%c0_64, %c0_65] : memref<1x32xf32, #tpu.memory_space<vmem>>, vector<1x32xf32>
    %169 = vector.broadcast %168 : vector<1x32xf32> to vector<2x32xf32>
    %170 = arith.addf %167, %169 : vector<2x32xf32>
    %171 = math.tanh %170 : vector<2x32xf32>
    %172 = arith.truncf %171 : vector<2x32xf32> to vector<2x32xbf16>
    %c0_66 = arith.constant 0 : index
    %c0_67 = arith.constant 0 : index
    %173 = vector.load %arg19[%c0_66, %c0_67] : memref<32x4xbf16, #tpu.memory_space<vmem>>, vector<32x4xbf16>
    %cst_68 = arith.constant dense<0.000000e+00> : vector<2x4xf32>
    %174 = tpu.matmul %172, %173, %cst_68 {dimension_numbers = #tpu.dot_dimension_numbers<[1], [0], [0], [1], [0, 0, 1, 1], [], []>} : vector<2x32xbf16>, vector<32x4xbf16>, vector<2x4xf32> -> vector<2x4xf32>
    %c0_69 = arith.constant 0 : index
    %c0_70 = arith.constant 0 : index
    %175 = vector.load %arg20[%c0_69, %c0_70] : memref<1x4xf32, #tpu.memory_space<vmem>>, vector<1x4xf32>
    %176 = vector.broadcast %175 : vector<1x4xf32> to vector<2x4xf32>
    %177 = arith.addf %174, %176 : vector<2x4xf32>
    %c0_71 = arith.constant 0 : index
    %c0_72 = arith.constant 0 : index
    %178 = vector.load %arg21[%c0_71, %c0_72] : memref<2x4xf32, #tpu.memory_space<vmem>>, vector<2x4xf32>
    tpu.vector_store %arg21[%c0_71, %c0_72], %177 {strides = array<i32>} : memref<2x4xf32, #tpu.memory_space<vmem>>, vector<2x4xf32>,
    return
  }
  func.func @transform_0(%arg0: i32) -> (i32, i32) {
    %c0_i32 = arith.constant 0 : i32
    %c0_i32_0 = arith.constant 0 : i32
    return %arg0, %c0_i32 : i32, i32
  }
  func.func @transform_1(%arg0: i32) -> (i32, i32, i32) {
    %c0_i32 = arith.constant 0 : i32
    %c0_i32_0 = arith.constant 0 : i32
    %c0_i32_1 = arith.constant 0 : i32
    return %arg0, %c0_i32, %c0_i32_0 : i32, i32, i32
  }
  func.func @transform_2(%arg0: i32) -> (i32, i32) {
    %c0_i32 = arith.constant 0 : i32
    %c0_i32_0 = arith.constant 0 : i32
    %c0_i32_1 = arith.constant 0 : i32
    return %c0_i32, %c0_i32_0 : i32, i32
  }
  func.func @transform_3(%arg0: i32) -> (i32, i32) {
    %c0_i32 = arith.constant 0 : i32
    %c0_i32_0 = arith.constant 0 : i32
    %c0_i32_1 = arith.constant 0 : i32
    return %c0_i32, %c0_i32_0 : i32, i32
  }
  func.func @transform_4(%arg0: i32) -> (i32, i32) {
    %c0_i32 = arith.constant 0 : i32
    %c0_i32_0 = arith.constant 0 : i32
    %c0_i32_1 = arith.constant 0 : i32
    return %c0_i32, %c0_i32_0 : i32, i32
  }
  func.func @transform_5(%arg0: i32) -> (i32, i32) {
    %c0_i32 = arith.constant 0 : i32
    %c0_i32_0 = arith.constant 0 : i32
    %c0_i32_1 = arith.constant 0 : i32
    return %c0_i32, %c0_i32_0 : i32, i32
  }
  func.func @transform_6(%arg0: i32) -> (i32, i32) {
    %c0_i32 = arith.constant 0 : i32
    %c0_i32_0 = arith.constant 0 : i32
    %c0_i32_1 = arith.constant 0 : i32
    return %c0_i32, %c0_i32_0 : i32, i32
  }
  func.func @transform_7(%arg0: i32) -> (i32, i32) {
    %c0_i32 = arith.constant 0 : i32
    %c0_i32_0 = arith.constant 0 : i32
    %c0_i32_1 = arith.constant 0 : i32
    return %c0_i32, %c0_i32_0 : i32, i32
  }
  func.func @transform_8(%arg0: i32) -> (i32, i32) {
    %c0_i32 = arith.constant 0 : i32
    %c0_i32_0 = arith.constant 0 : i32
    %c0_i32_1 = arith.constant 0 : i32
    return %c0_i32, %c0_i32_0 : i32, i32
  }
  func.func @transform_9(%arg0: i32) -> (i32, i32) {
    %c0_i32 = arith.constant 0 : i32
    %c0_i32_0 = arith.constant 0 : i32
    %c0_i32_1 = arith.constant 0 : i32
    return %c0_i32, %c0_i32_0 : i32, i32
  }
  func.func @transform_10(%arg0: i32) -> (i32, i32) {
    %c0_i32 = arith.constant 0 : i32
    %c0_i32_0 = arith.constant 0 : i32
    %c0_i32_1 = arith.constant 0 : i32
    return %c0_i32, %c0_i32_0 : i32, i32
  }
  func.func @transform_11(%arg0: i32) -> (i32, i32) {
    %c0_i32 = arith.constant 0 : i32
    %c0_i32_0 = arith.constant 0 : i32
    %c0_i32_1 = arith.constant 0 : i32
    return %c0_i32, %c0_i32_0 : i32, i32
  }
  func.func @transform_12(%arg0: i32) -> (i32, i32) {
    %c0_i32 = arith.constant 0 : i32
    %c0_i32_0 = arith.constant 0 : i32
    %c0_i32_1 = arith.constant 0 : i32
    return %c0_i32, %c0_i32_0 : i32, i32
  }
  func.func @transform_13(%arg0: i32) -> (i32, i32) {
    %c0_i32 = arith.constant 0 : i32
    %c0_i32_0 = arith.constant 0 : i32
    %c0_i32_1 = arith.constant 0 : i32
    return %c0_i32, %c0_i32_0 : i32, i32
  }
  func.func @transform_14(%arg0: i32) -> (i32, i32) {
    %c0_i32 = arith.constant 0 : i32
    %c0_i32_0 = arith.constant 0 : i32
    %c0_i32_1 = arith.constant 0 : i32
    return %c0_i32, %c0_i32_0 : i32, i32
  }
  func.func @transform_15(%arg0: i32) -> (i32, i32) {
    %c0_i32 = arith.constant 0 : i32
    %c0_i32_0 = arith.constant 0 : i32
    %c0_i32_1 = arith.constant 0 : i32
    return %c0_i32, %c0_i32_0 : i32, i32
  }
  func.func @transform_16(%arg0: i32) -> (i32, i32) {
    %c0_i32 = arith.constant 0 : i32
    %c0_i32_0 = arith.constant 0 : i32
    %c0_i32_1 = arith.constant 0 : i32
    return %c0_i32, %c0_i32_0 : i32, i32
  }
  func.func @transform_17(%arg0: i32) -> (i32, i32) {
    %c0_i32 = arith.constant 0 : i32
    %c0_i32_0 = arith.constant 0 : i32
    %c0_i32_1 = arith.constant 0 : i32
    return %c0_i32, %c0_i32_0 : i32, i32
  }
  func.func @transform_18(%arg0: i32) -> (i32, i32) {
    %c0_i32 = arith.constant 0 : i32
    %c0_i32_0 = arith.constant 0 : i32
    %c0_i32_1 = arith.constant 0 : i32
    return %c0_i32, %c0_i32_0 : i32, i32
  }
  func.func @transform_19(%arg0: i32) -> (i32, i32) {
    %c0_i32 = arith.constant 0 : i32
    %c0_i32_0 = arith.constant 0 : i32
    %c0_i32_1 = arith.constant 0 : i32
    return %c0_i32, %c0_i32_0 : i32, i32
  }
  func.func @transform_20(%arg0: i32) -> (i32, i32) {
    %c0_i32 = arith.constant 0 : i32
    %c0_i32_0 = arith.constant 0 : i32
    return %arg0, %c0_i32 : i32, i32
  }
}

</mosaic_0001>

<llo_original>
// kernel: transformer_cls_forward.1
$region0: #{transformer_cls_forward.1}
  #allocation0 [shape = 'u32[]', space=smem, size = 0x4, offset = 0x4, fixed_abs, tag = 'smem constant byte address 0x4 - core index']
  #allocation1 [shape = 'u32[144,128]{1,0:T(1,128)}', space=vmem, size = 0x12000, scoped, tag = 'internal scratch']
  %s0 = inlined_call_operand.vmem [shape: bf16[16,32], index: 0, kind: input, shape index: {}]
  %s1 = inlined_call_operand.vmem [shape: f32[2,1,8], index: 1, kind: input, shape index: {}]
  %s2 = inlined_call_operand.vmem [shape: f32[1,32], index: 2, kind: input, shape index: {}]
  %s3 = inlined_call_operand.vmem [shape: f32[1,32], index: 3, kind: input, shape index: {}]
  %s4 = inlined_call_operand.vmem [shape: bf16[32,96], index: 4, kind: input, shape index: {}]
  %s5 = inlined_call_operand.vmem [shape: f32[1,96], index: 5, kind: input, shape index: {}]
  %s6 = inlined_call_operand.vmem [shape: bf16[32,32], index: 6, kind: input, shape index: {}]
  %s7 = inlined_call_operand.vmem [shape: f32[1,32], index: 7, kind: input, shape index: {}]
  %s8 = inlined_call_operand.vmem [shape: f32[1,32], index: 8, kind: input, shape index: {}]
  %s9 = inlined_call_operand.vmem [shape: f32[1,32], index: 9, kind: input, shape index: {}]
  %s10 = inlined_call_operand.vmem [shape: bf16[32,64], index: 10, kind: input, shape index: {}]
  %s11 = inlined_call_operand.vmem [shape: f32[1,64], index: 11, kind: input, shape index: {}]
  %s12 = inlined_call_operand.vmem [shape: bf16[64,32], index: 12, kind: input, shape index: {}]
  %s13 = inlined_call_operand.vmem [shape: f32[1,32], index: 13, kind: input, shape index: {}]
  %s14 = inlined_call_operand.vmem [shape: f32[1,32], index: 14, kind: input, shape index: {}]
  %s15 = inlined_call_operand.vmem [shape: f32[1,32], index: 15, kind: input, shape index: {}]
  %s16 = inlined_call_operand.vmem [shape: bf16[32,32], index: 16, kind: input, shape index: {}]
  %s17 = inlined_call_operand.vmem [shape: f32[1,32], index: 17, kind: input, shape index: {}]
  %s18 = inlined_call_operand.vmem [shape: bf16[32,4], index: 18, kind: input, shape index: {}]
  %s19 = inlined_call_operand.vmem [shape: f32[1,4], index: 19, kind: input, shape index: {}]
  %s20 = inlined_call_operand.hbm [shape: f32[2,4], index: 20, kind: output, shape index: {}]
  %s21 = sld [smem:[#allocation0]]
  $region90: #{transformer_cls_forward.1} parent=0
    _
  %s23 = ssub.s32 1, %s21
  %s24 = scalar_select 0, %s23, %s21
  $region1: #{transformer_cls_forward.1} parent=0
    #allocation2 [shape = 'u8[1024]{0}', space=vmem, size = 0x400, scoped, tag = 'output window, operand 0, single buffered']
    #allocation3 [shape = 's32[1]{0}', space=sflag, size = 0x4, scoped, tag = 'scoped memory for transformer_cls_forward.1']
    %25 = vsyncpa [#allocation3], 0
    // Predicated region
    $region2: #{transformer_cls_forward.1} parent=1 // pred_check
      _
    $region3: #{transformer_cls_forward.1} parent=1 // pred_check_branch
      %27 = sbr.rel (0) target = $region5
    $region4: #{transformer_cls_forward.1} parent=1 // pred_region
      _
    $region5: #{transformer_cls_forward.1} parent=1 // pred_fallthru
      _
    // Predicated region
    $region6: #{transformer_cls_forward.1} parent=1 // pred_check
      _
    $region7: #{transformer_cls_forward.1} parent=1 // pred_check_branch
      %29 = sbr.rel (0) target = $region9
    $region8: #{transformer_cls_forward.1} parent=1 // pred_region
      _
    $region9: #{transformer_cls_forward.1} parent=1 // pred_fallthru
      _
    // Predicated region
    $region10: #{transformer_cls_forward.1} parent=1 // pred_check
      _
    $region11: #{transformer_cls_forward.1} parent=1 // pred_check_branch
      %31 = sbr.rel (0) target = $region13
    $region12: #{transformer_cls_forward.1} parent=1 // pred_region
      _
    $region13: #{transformer_cls_forward.1} parent=1 // pred_fallthru
      _
    // Predicated region
    $region14: #{transformer_cls_forward.1} parent=1 // pred_check
      _
    $region15: #{transformer_cls_forward.1} parent=1 // pred_check_branch
      %33 = sbr.rel (0) target = $region17
    $region16: #{transformer_cls_forward.1} parent=1 // pred_region
      _
    $region17: #{transformer_cls_forward.1} parent=1 // pred_fallthru
      _
    // Predicated region
    $region18: #{transformer_cls_forward.1} parent=1 // pred_check
      _
    $region19: #{transformer_cls_forward.1} parent=1 // pred_check_branch
      %35 = sbr.rel (0) target = $region21
    $region20: #{transformer_cls_forward.1} parent=1 // pred_region
      _
    $region21: #{transformer_cls_forward.1} parent=1 // pred_fallthru
      _
    // Predicated region
    $region22: #{transformer_cls_forward.1} parent=1 // pred_check
      _
    $region23: #{transformer_cls_forward.1} parent=1 // pred_check_branch
      %37 = sbr.rel (0) target = $region25
    $region24: #{transformer_cls_forward.1} parent=1 // pred_region
      _
    $region25: #{transformer_cls_forward.1} parent=1 // pred_fallthru
      _
    // Predicated region
    $region26: #{transformer_cls_forward.1} parent=1 // pred_check
      _
    $region27: #{transformer_cls_forward.1} parent=1 // pred_check_branch
      %39 = sbr.rel (0) target = $region29
    $region28: #{transformer_cls_forward.1} parent=1 // pred_region
      _
    $region29: #{transformer_cls_forward.1} parent=1 // pred_fallthru
      _
    // Predicated region
    $region30: #{transformer_cls_forward.1} parent=1 // pred_check
      _
    $region31: #{transformer_cls_forward.1} parent=1 // pred_check_branch
      %41 = sbr.rel (0) target = $region33
    $region32: #{transformer_cls_forward.1} parent=1 // pred_region
      _
    $region33: #{transformer_cls_forward.1} parent=1 // pred_fallthru
      _
    // Predicated region
    $region34: #{transformer_cls_forward.1} parent=1 // pred_check
      _
    $region35: #{transformer_cls_forward.1} parent=1 // pred_check_branch
      %43 = sbr.rel (0) target = $region37
    $region36: #{transformer_cls_forward.1} parent=1 // pred_region
      _
    $region37: #{transformer_cls_forward.1} parent=1 // pred_fallthru
      _
    // Predicated region
    $region38: #{transformer_cls_forward.1} parent=1 // pred_check
      _
    $region39: #{transformer_cls_forward.1} parent=1 // pred_check_branch
      %45 = sbr.rel (0) target = $region41
    $region40: #{transformer_cls_forward.1} parent=1 // pred_region
      _
    $region41: #{transformer_cls_forward.1} parent=1 // pred_fallthru
      _
    // Predicated region
    $region42: #{transformer_cls_forward.1} parent=1 // pred_check
      _
    $region43: #{transformer_cls_forward.1} parent=1 // pred_check_branch
      %47 = sbr.rel (0) target = $region45
    $region44: #{transformer_cls_forward.1} parent=1 // pred_region
      _
    $region45: #{transformer_cls_forward.1} parent=1 // pred_fallthru
      _
    // Predicated region
    $region46: #{transformer_cls_forward.1} parent=1 // pred_check
      _
    $region47: #{transformer_cls_forward.1} parent=1 // pred_check_branch
      %49 = sbr.rel (0) target = $region49
    $region48: #{transformer_cls_forward.1} parent=1 // pred_region
      _
    $region49: #{transformer_cls_forward.1} parent=1 // pred_fallthru
      _
    // Predicated region
    $region50: #{transformer_cls_forward.1} parent=1 // pred_check
      _
    $region51: #{transformer_cls_forward.1} parent=1 // pred_check_branch
      %51 = sbr.rel (0) target = $region53
    $region52: #{transformer_cls_forward.1} parent=1 // pred_region
      _
    $region53: #{transformer_cls_forward.1} parent=1 // pred_fallthru
      _
    // Predicated region
    $region54: #{transformer_cls_forward.1} parent=1 // pred_check
      _
    $region55: #{transformer_cls_forward.1} parent=1 // pred_check_branch
      %53 = sbr.rel (0) target = $region57
    $region56: #{transformer_cls_forward.1} parent=1 // pred_region
      _
    $region57: #{transformer_cls_forward.1} parent=1 // pred_fallthru
      _
    // Predicated region
    $region58: #{transformer_cls_forward.1} parent=1 // pred_check
      _
    $region59: #{transformer_cls_forward.1} parent=1 // pred_check_branch
      %55 = sbr.rel (0) target = $region61
    $region60: #{transformer_cls_forward.1} parent=1 // pred_region
      _
    $region61: #{transformer_cls_forward.1} parent=1 // pred_fallthru
      _
    // Predicated region
    $region62: #{transformer_cls_forward.1} parent=1 // pred_check
      _
    $region63: #{transformer_cls_forward.1} parent=1 // pred_check_branch
      %57 = sbr.rel (0) target = $region65
    $region64: #{transformer_cls_forward.1} parent=1 // pred_region
      _
    $region65: #{transformer_cls_forward.1} parent=1 // pred_fallthru
      _
    // Predicated region
    $region66: #{transformer_cls_forward.1} parent=1 // pred_check
      _
    $region67: #{transformer_cls_forward.1} parent=1 // pred_check_branch
      %59 = sbr.rel (0) target = $region69
    $region68: #{transformer_cls_forward.1} parent=1 // pred_region
      _
    $region69: #{transformer_cls_forward.1} parent=1 // pred_fallthru
      _
    // Predicated region
    $region70: #{transformer_cls_forward.1} parent=1 // pred_check
      _
    $region71: #{transformer_cls_forward.1} parent=1 // pred_check_branch
      %61 = sbr.rel (0) target = $region73
    $region72: #{transformer_cls_forward.1} parent=1 // pred_region
      _
    $region73: #{transformer_cls_forward.1} parent=1 // pred_fallthru
      _
    // Predicated region
    $region74: #{transformer_cls_forward.1} parent=1 // pred_check
      _
    $region75: #{transformer_cls_forward.1} parent=1 // pred_check_branch
      %63 = sbr.rel (0) target = $region77
    $region76: #{transformer_cls_forward.1} parent=1 // pred_region
      _
    $region77: #{transformer_cls_forward.1} parent=1 // pred_fallthru
      _
    // Predicated region
    $region78: #{transformer_cls_forward.1} parent=1 // pred_check
      _
    $region79: #{transformer_cls_forward.1} parent=1 // pred_check_branch
      %65 = sbr.rel (0) target = $region81
    $region80: #{transformer_cls_forward.1} parent=1 // pred_region
      _
    $region81: #{transformer_cls_forward.1} parent=1 // pred_fallthru
      _
    %v67 = vld [vmem:[%s0] sm:$0xf]
    %v68 = vld [vmem:[%s0 + $0x4] sm:$0xf]
    %v69 = vunpack.c.l.bf16 %v67
    %v70 = vunpack.c.l.bf16 %v68
    %v71 = vld [vmem:[%s2] sm:$0x1]
    %v72 = vld [vmem:[%s3] sm:$0x1]
    %vm73 = vcmask 261120
    %v74 = vsel %vm73, %v69, 0.0
    %75 = vadd.xlane.f32.xlu0 %v74
    %v76 = vpop.xlane.xlu0 %75
    %v77 = vsel %vm73, %v70, 0.0
    %78 = vadd.xlane.f32.xlu0 %v77
    %v79 = vpop.xlane.xlu0 %78
    %v80 = vmul.f32 %v69, %v69
    %v81 = vmul.f32 %v70, %v70
    %v82 = vsel %vm73, %v80, 0.0
    %83 = vadd.xlane.f32.xlu0 %v82
    %v84 = vpop.xlane.xlu0 %83
    %v85 = vsel %vm73, %v81, 0.0
    %86 = vadd.xlane.f32.xlu0 %v85
    %v87 = vpop.xlane.xlu0 %86
    %v88 = vmul.f32 %v76, 0.03125
    %v89 = vmul.f32 %v79, 0.03125
    %v90 = vmul.f32 %v88, 32.0
    %v91 = vmul.f32 %v89, 32.0
    %v92 = vmul.f32 %v90, %v88
    %v93 = vmul.f32 %v91, %v89
    %v94 = vsub.f32 %v84, %v92
    %v95 = vsub.f32 %v87, %v93
    %v96 = vmul.f32 %v94, 0.032258064
    %v97 = vmul.f32 %v95, 0.032258064
    %v98 = vmax.f32 %v96, 0.0
    %v99 = vmax.f32 %v97, 0.0
    %v100 = vrsqrt.pop %v98
    %v101 = vmul.f32 %v98, %v100
    %vm102 = vcmp.eq.f32.partialorder %v98, inf
    %v103 = vsel %vm102, %v98, %v101
    %vm104 = vcmp.eq.f32.partialorder %v98, 0.0
    %v105 = vand.u32 %v98, 2147483648
    %v106 = vsel %vm104, %v105, %v103
    %v107 = vrsqrt.pop %v99
    %v108 = vmul.f32 %v99, %v107
    %vm109 = vcmp.eq.f32.partialorder %v99, inf
    %v110 = vsel %vm109, %v99, %v108
    %vm111 = vcmp.eq.f32.partialorder %v99, 0.0
    %v112 = vand.u32 %v99, 2147483648
    %v113 = vsel %vm111, %v112, %v110
    %v114 = vadd.f32 %v106, 1e-06
    %v115 = vadd.f32 %v113, 1e-06
    %v116 = vrcp.pop %v114
    %v117 = vrcp.pop %v115
    %v118 = vsub.f32 %v69, %v88
    %v119 = vsub.f32 %v70, %v89
    %v121 = vlaneseq
    %v122 = vshrl.u32 %v121, 7
    %v123 = vsub.s32 0, %v122
    %v124 = vrot.slane %v71, %v123
    %v126 = vmul.f32 %v124, %v118
    %v127 = vmul.f32 %v124, %v119
    %v128 = vmul.f32 %v126, %v116
    %v129 = vmul.f32 %v127, %v117
    %v131 = vlaneseq
    %v132 = vshrl.u32 %v131, 7
    %v133 = vsub.s32 0, %v132
    %v134 = vrot.slane %v72, %v133
    %v136 = vadd.f32 %v128, %v134
    %v137 = vadd.f32 %v129, %v134
    %v138 = vpack.c.bf16 %v137, %v136
    %v139 = vld [vmem:[%s4] sm:$0xf]
    %v140 = vld [vmem:[%s4 + $0x4] sm:$0xf]
    %v141 = vld [vmem:[%s4 + $0x8] sm:$0xf]
    %v142 = vld [vmem:[%s4 + $0xc] sm:$0xf]
    %v143 = vld [vmem:[%s5] sm:$0x1]
    %v145 = vlaneseq
    %v146 = vshrl.u32 %v145, 7
    %v147 = vsub.s32 0, %v146
    %v148 = vrot.slane %v143, %v147
    %v154 = vunpack.c.l.b16 %v139
    %v155 = vunpack.c.l.b16 %v140
    %v156 = vunpack.c.l.b16 %v141
    %v157 = vunpack.c.l.b16 %v142
    %v158 = vpack.c.b16 %v155, %v154
    %v159 = vpack.c.b16 %v157, %v156
    %v163 = vsel %vm73, %v138, 0
    %165 = vmatprep.subr.bf16.mxu0 0
    %166 = vmatpush1.bf16.msra.mxu0 %v158
    %167 = vmatprep.subr.bf16.mxu0 0
    %168 = vmatpush1.bf16.msra.mxu0 %v159
    %169 = vmatprep.subr.bf16.mxu0 0
    %170 = vmatpush1.bf16.msra.mxu0 0
    %171 = vmatprep.subr.bf16.mxu0 0
    %172 = vmatpush1.bf16.msra.mxu0 0
    %173 = vmatprep.subr.bf16.mxu0 0
    %174 = vmatpush1.bf16.msra.mxu0 0
    %175 = vmatprep.subr.bf16.mxu0 0
    %176 = vmatpush1.bf16.msra.mxu0 0
    %177 = vmatprep.subr.bf16.mxu0 0
    %178 = vmatpush1.bf16.msra.mxu0 0
    %179 = vmatprep.subr.bf16.mxu0 0
    %180 = vmatpush1.bf16.msra.mxu0 0
    %181 = vmatprep.subr.bf16.mxu0 0
    %182 = vmatpush1.bf16.msra.mxu0 0
    %183 = vmatprep.subr.bf16.mxu0 0
    %184 = vmatpush1.bf16.msra.mxu0 0
    %185 = vmatprep.subr.bf16.mxu0 0
    %186 = vmatpush1.bf16.msra.mxu0 0
    %187 = vmatprep.subr.bf16.mxu0 0
    %188 = vmatpush1.bf16.msra.mxu0 0
    %189 = vmatprep.subr.bf16.mxu0 0
    %190 = vmatpush1.bf16.msra.mxu0 0
    %191 = vmatprep.subr.bf16.mxu0 0
    %192 = vmatpush1.bf16.msra.mxu0 0
    %193 = vmatprep.subr.bf16.mxu0 0
    %194 = vmatpush1.bf16.msra.mxu0 0
    %195 = vmatprep.subr.bf16.mxu0 0
    %196 = vmatpush1.bf16.msra.mxu0 0
    %197 = vmatprep.mubr.bf16.mxu0 0
    %198 = vmatmul.mubr.bf16.gmra.mrb[0].mxu0 %v163
    %v199 = vpop.f32.mrb[0].mxu0
    %v200 = vadd.f32 %v148, %v199
    %v201 = vpop.f32.mrb[0].mxu0
    %v202 = vpop.f32.mrb[0].mxu0
    %v203 = vadd.f32 %v148, %v202
    %v204 = vpop.f32.mrb[0].mxu0
    %205 = vdwg.mxu0
    %v206 = vpack.c.bf16 %v203, %v200
    %v208 = vunpack.c.l.b16 %v206
    %v209 = vunpack.c.h.b16 %v206
    %v210 = vpack.c.b16 %v208, %v208
    %v211 = vpack.c.b16 %v209, %v209
    %212 = vrot.lane.b32.xlu0 %v210, 120
    %v213 = vpop.permute.xlu0 %212
    %214 = vrot.lane.b32.xlu0 %v211, 120
    %v215 = vpop.permute.xlu0 %214
    %216 = vrot.lane.b32.xlu0 %v210, 112
    %v217 = vpop.permute.xlu0 %216
    %218 = vrot.lane.b32.xlu0 %v211, 112
    %v219 = vpop.permute.xlu0 %218
    %220 = vrot.lane.b32.xlu0 %v210, 104
    %v221 = vpop.permute.xlu0 %220
    %222 = vrot.lane.b32.xlu0 %v211, 104
    %v223 = vpop.permute.xlu0 %222
    %v224 = vld [vmem:[%s1] sm:$0x1]
    %v225 = vld [vmem:[%s1 + $0x1] sm:$0x1]
    %v228 = vlaneseq
    %v229 = vshrl.u32 %v228, 7
    %v230 = vsub.s32 0, %v229
    %v231 = vrot.slane %v224, %v230
    %v232 = vlaneseq
    %v233 = vshrl.u32 %v232, 7
    %v234 = vsub.s32 0, %v233
    %v235 = vrot.slane %v225, %v234
    %238 = vrot.lane.b32.xlu0 %v210, 96
    %v239 = vpop.permute.xlu0 %238
    %vm240 = vcmask 64512
    %v242 = vsel %vm240, %v210, 0
    %v245 = vsel %vm240, %v239, 0
    %247 = vmatprep.subr.bf16.mxu0 0
    %248 = vmatpush1.bf16.xpose.msra.mxu0 %v245
    %249 = vmatprep.subr.bf16.mxu0 0
    %250 = vmatpush1.bf16.xpose.msra.mxu0 0
    %251 = vmatprep.subr.bf16.mxu0 0
    %252 = vmatpush1.bf16.xpose.msra.mxu0 0
    %253 = vmatprep.subr.bf16.mxu0 0
    %254 = vmatpush1.bf16.xpose.msra.mxu0 0
    %255 = vmatprep.subr.bf16.mxu0 0
    %256 = vmatpush1.bf16.xpose.msra.mxu0 0
    %257 = vmatprep.subr.bf16.mxu0 0
    %258 = vmatpush1.bf16.xpose.msra.mxu0 0
    %259 = vmatprep.subr.bf16.mxu0 0
    %260 = vmatpush1.bf16.xpose.msra.mxu0 0
    %261 = vmatprep.subr.bf16.mxu0 0
    %262 = vmatpush1.bf16.xpose.msra.mxu0 0
    %263 = vmatprep.subr.bf16.mxu0 0
    %264 = vmatpush1.bf16.xpose.msra.mxu0 0
    %265 = vmatprep.subr.bf16.mxu0 0
    %266 = vmatpush1.bf16.xpose.msra.mxu0 0
    %267 = vmatprep.subr.bf16.mxu0 0
    %268 = vmatpush1.bf16.xpose.msra.mxu0 0
    %269 = vmatprep.subr.bf16.mxu0 0
    %270 = vmatpush1.bf16.xpose.msra.mxu0 0
    %271 = vmatprep.subr.bf16.mxu0 0
    %272 = vmatpush1.bf16.xpose.msra.mxu0 0
    %273 = vmatprep.subr.bf16.mxu0 0
    %274 = vmatpush1.bf16.xpose.msra.mxu0 0
    %275 = vmatprep.subr.bf16.mxu0 0
    %276 = vmatpush1.bf16.xpose.msra.mxu0 0
    %277 = vmatprep.subr.bf16.mxu0 0
    %278 = vmatpush1.bf16.xpose.msra.mxu0 0
    %279 = vmatprep.mubr.bf16.mxu0 0
    %280 = vmatmul.mubr.bf16.gmra.mrb[0].mxu0 %v242
    %v281 = vpop.f32.mrb[0].mxu0
    %v282 = vadd.f32 %v231, %v281
    %v283 = vpop.f32.mrb[0].mxu0
    %v284 = vpop.f32.mrb[0].mxu0
    %v285 = vpop.f32.mrb[0].mxu0
    %286 = vdwg.mxu0
    %287 = vrot.lane.b32.xlu0 %v211, 96
    %v288 = vpop.permute.xlu0 %287
    %v290 = vsel %vm240, %v211, 0
    %v293 = vsel %vm240, %v288, 0
    %295 = vmatprep.subr.bf16.mxu0 0
    %296 = vmatpush1.bf16.xpose.msra.mxu0 %v293
    %297 = vmatprep.subr.bf16.mxu0 0
    %298 = vmatpush1.bf16.xpose.msra.mxu0 0
    %299 = vmatprep.subr.bf16.mxu0 0
    %300 = vmatpush1.bf16.xpose.msra.mxu0 0
    %301 = vmatprep.subr.bf16.mxu0 0
    %302 = vmatpush1.bf16.xpose.msra.mxu0 0
    %303 = vmatprep.subr.bf16.mxu0 0
    %304 = vmatpush1.bf16.xpose.msra.mxu0 0
    %305 = vmatprep.subr.bf16.mxu0 0
    %306 = vmatpush1.bf16.xpose.msra.mxu0 0
    %307 = vmatprep.subr.bf16.mxu0 0
    %308 = vmatpush1.bf16.xpose.msra.mxu0 0
    %309 = vmatprep.subr.bf16.mxu0 0
    %310 = vmatpush1.bf16.xpose.msra.mxu0 0
    %311 = vmatprep.subr.bf16.mxu0 0
    %312 = vmatpush1.bf16.xpose.msra.mxu0 0
    %313 = vmatprep.subr.bf16.mxu0 0
    %314 = vmatpush1.bf16.xpose.msra.mxu0 0
    %315 = vmatprep.subr.bf16.mxu0 0
    %316 = vmatpush1.bf16.xpose.msra.mxu0 0
    %317 = vmatprep.subr.bf16.mxu0 0
    %318 = vmatpush1.bf16.xpose.msra.mxu0 0
    %319 = vmatprep.subr.bf16.mxu0 0
    %320 = vmatpush1.bf16.xpose.msra.mxu0 0
    %321 = vmatprep.subr.bf16.mxu0 0
    %322 = vmatpush1.bf16.xpose.msra.mxu0 0
    %323 = vmatprep.subr.bf16.mxu0 0
    %324 = vmatpush1.bf16.xpose.msra.mxu0 0
    %325 = vmatprep.subr.bf16.mxu0 0
    %326 = vmatpush1.bf16.xpose.msra.mxu0 0
    %327 = vmatprep.mubr.bf16.mxu0 0
    %328 = vmatmul.mubr.bf16.gmra.mrb[0].mxu0 %v290
    %v329 = vpop.f32.mrb[0].mxu0
    %v330 = vadd.f32 %v235, %v329
    %v331 = vpop.f32.mrb[0].mxu0
    %v332 = vpop.f32.mrb[0].mxu0
    %v333 = vpop.f32.mrb[0].mxu0
    %334 = vdwg.mxu0
    %v335 = vunpack.c.l.b16 %v213
    %v336 = vpack.c.b16 %v335, %v335
    %337 = vrot.lane.b32.xlu0 %v336, 96
    %v338 = vpop.permute.xlu0 %337
    %v340 = vsel %vm240, %v213, 0
    %v343 = vsel %vm240, %v338, 0
    %345 = vmatprep.subr.bf16.mxu0 0
    %346 = vmatpush1.bf16.xpose.msra.mxu0 %v343
    %347 = vmatprep.subr.bf16.mxu0 0
    %348 = vmatpush1.bf16.xpose.msra.mxu0 0
    %349 = vmatprep.subr.bf16.mxu0 0
    %350 = vmatpush1.bf16.xpose.msra.mxu0 0
    %351 = vmatprep.subr.bf16.mxu0 0
    %352 = vmatpush1.bf16.xpose.msra.mxu0 0
    %353 = vmatprep.subr.bf16.mxu0 0
    %354 = vmatpush1.bf16.xpose.msra.mxu0 0
    %355 = vmatprep.subr.bf16.mxu0 0
    %356 = vmatpush1.bf16.xpose.msra.mxu0 0
    %357 = vmatprep.subr.bf16.mxu0 0
    %358 = vmatpush1.bf16.xpose.msra.mxu0 0
    %359 = vmatprep.subr.bf16.mxu0 0
    %360 = vmatpush1.bf16.xpose.msra.mxu0 0
    %361 = vmatprep.subr.bf16.mxu0 0
    %362 = vmatpush1.bf16.xpose.msra.mxu0 0
    %363 = vmatprep.subr.bf16.mxu0 0
    %364 = vmatpush1.bf16.xpose.msra.mxu0 0
    %365 = vmatprep.subr.bf16.mxu0 0
    %366 = vmatpush1.bf16.xpose.msra.mxu0 0
    %367 = vmatprep.subr.bf16.mxu0 0
    %368 = vmatpush1.bf16.xpose.msra.mxu0 0
    %369 = vmatprep.subr.bf16.mxu0 0
    %370 = vmatpush1.bf16.xpose.msra.mxu0 0
    %371 = vmatprep.subr.bf16.mxu0 0
    %372 = vmatpush1.bf16.xpose.msra.mxu0 0
    %373 = vmatprep.subr.bf16.mxu0 0
    %374 = vmatpush1.bf16.xpose.msra.mxu0 0
    %375 = vmatprep.subr.bf16.mxu0 0
    %376 = vmatpush1.bf16.xpose.msra.mxu0 0
    %377 = vmatprep.mubr.bf16.mxu0 0
    %378 = vmatmul.mubr.bf16.gmra.mrb[0].mxu0 %v340
    %v379 = vpop.f32.mrb[0].mxu0
    %v380 = vadd.f32 %v231, %v379
    %v381 = vpop.f32.mrb[0].mxu0
    %v382 = vpop.f32.mrb[0].mxu0
    %v383 = vpop.f32.mrb[0].mxu0
    %384 = vdwg.mxu0
    %v385 = vunpack.c.l.b16 %v215
    %v386 = vpack.c.b16 %v385, %v385
    %387 = vrot.lane.b32.xlu0 %v386, 96
    %v388 = vpop.permute.xlu0 %387
    %v390 = vsel %vm240, %v215, 0
    %v393 = vsel %vm240, %v388, 0
    %395 = vmatprep.subr.bf16.mxu0 0
    %396 = vmatpush1.bf16.xpose.msra.mxu0 %v393
    %397 = vmatprep.subr.bf16.mxu0 0
    %398 = vmatpush1.bf16.xpose.msra.mxu0 0
    %399 = vmatprep.subr.bf16.mxu0 0
    %400 = vmatpush1.bf16.xpose.msra.mxu0 0
    %401 = vmatprep.subr.bf16.mxu0 0
    %402 = vmatpush1.bf16.xpose.msra.mxu0 0
    %403 = vmatprep.subr.bf16.mxu0 0
    %404 = vmatpush1.bf16.xpose.msra.mxu0 0
    %405 = vmatprep.subr.bf16.mxu0 0
    %406 = vmatpush1.bf16.xpose.msra.mxu0 0
    %407 = vmatprep.subr.bf16.mxu0 0
    %408 = vmatpush1.bf16.xpose.msra.mxu0 0
    %409 = vmatprep.subr.bf16.mxu0 0
    %410 = vmatpush1.bf16.xpose.msra.mxu0 0
    %411 = vmatprep.subr.bf16.mxu0 0
    %412 = vmatpush1.bf16.xpose.msra.mxu0 0
    %413 = vmatprep.subr.bf16.mxu0 0
    %414 = vmatpush1.bf16.xpose.msra.mxu0 0
    %415 = vmatprep.subr.bf16.mxu0 0
    %416 = vmatpush1.bf16.xpose.msra.mxu0 0
    %417 = vmatprep.subr.bf16.mxu0 0
    %418 = vmatpush1.bf16.xpose.msra.mxu0 0
    %419 = vmatprep.subr.bf16.mxu0 0
    %420 = vmatpush1.bf16.xpose.msra.mxu0 0
    %421 = vmatprep.subr.bf16.mxu0 0
    %422 = vmatpush1.bf16.xpose.msra.mxu0 0
    %423 = vmatprep.subr.bf16.mxu0 0
    %424 = vmatpush1.bf16.xpose.msra.mxu0 0
    %425 = vmatprep.subr.bf16.mxu0 0
    %426 = vmatpush1.bf16.xpose.msra.mxu0 0
    %427 = vmatprep.mubr.bf16.mxu0 0
    %428 = vmatmul.mubr.bf16.gmra.mrb[0].mxu0 %v390
    %v429 = vpop.f32.mrb[0].mxu0
    %v430 = vadd.f32 %v235, %v429
    %v431 = vpop.f32.mrb[0].mxu0
    %v432 = vpop.f32.mrb[0].mxu0
    %v433 = vpop.f32.mrb[0].mxu0
    %434 = vdwg.mxu0
    %v435 = vunpack.c.l.b16 %v217
    %v436 = vpack.c.b16 %v435, %v435
    %437 = vrot.lane.b32.xlu0 %v436, 96
    %v438 = vpop.permute.xlu0 %437
    %v440 = vsel %vm240, %v217, 0
    %v443 = vsel %vm240, %v438, 0
    %445 = vmatprep.subr.bf16.mxu0 0
    %446 = vmatpush1.bf16.xpose.msra.mxu0 %v443
    %447 = vmatprep.subr.bf16.mxu0 0
    %448 = vmatpush1.bf16.xpose.msra.mxu0 0
    %449 = vmatprep.subr.bf16.mxu0 0
    %450 = vmatpush1.bf16.xpose.msra.mxu0 0
    %451 = vmatprep.subr.bf16.mxu0 0
    %452 = vmatpush1.bf16.xpose.msra.mxu0 0
    %453 = vmatprep.subr.bf16.mxu0 0
    %454 = vmatpush1.bf16.xpose.msra.mxu0 0
    %455 = vmatprep.subr.bf16.mxu0 0
    %456 = vmatpush1.bf16.xpose.msra.mxu0 0
    %457 = vmatprep.subr.bf16.mxu0 0
    %458 = vmatpush1.bf16.xpose.msra.mxu0 0
    %459 = vmatprep.subr.bf16.mxu0 0
    %460 = vmatpush1.bf16.xpose.msra.mxu0 0
    %461 = vmatprep.subr.bf16.mxu0 0
    %462 = vmatpush1.bf16.xpose.msra.mxu0 0
    %463 = vmatprep.subr.bf16.mxu0 0
    %464 = vmatpush1.bf16.xpose.msra.mxu0 0
    %465 = vmatprep.subr.bf16.mxu0 0
    %466 = vmatpush1.bf16.xpose.msra.mxu0 0
    %467 = vmatprep.subr.bf16.mxu0 0
    %468 = vmatpush1.bf16.xpose.msra.mxu0 0
    %469 = vmatprep.subr.bf16.mxu0 0
    %470 = vmatpush1.bf16.xpose.msra.mxu0 0
    %471 = vmatprep.subr.bf16.mxu0 0
    %472 = vmatpush1.bf16.xpose.msra.mxu0 0
    %473 = vmatprep.subr.bf16.mxu0 0
    %474 = vmatpush1.bf16.xpose.msra.mxu0 0
    %475 = vmatprep.subr.bf16.mxu0 0
    %476 = vmatpush1.bf16.xpose.msra.mxu0 0
    %477 = vmatprep.mubr.bf16.mxu0 0
    %478 = vmatmul.mubr.bf16.gmra.mrb[0].mxu0 %v440
    %v479 = vpop.f32.mrb[0].mxu0
    %v480 = vadd.f32 %v231, %v479
    %v481 = vpop.f32.mrb[0].mxu0
    %v482 = vpop.f32.mrb[0].mxu0
    %v483 = vpop.f32.mrb[0].mxu0
    %484 = vdwg.mxu0
    %v485 = vunpack.c.l.b16 %v219
    %v486 = vpack.c.b16 %v485, %v485
    %487 = vrot.lane.b32.xlu0 %v486, 96
    %v488 = vpop.permute.xlu0 %487
    %v490 = vsel %vm240, %v219, 0
    %v493 = vsel %vm240, %v488, 0
    %495 = vmatprep.subr.bf16.mxu0 0
    %496 = vmatpush1.bf16.xpose.msra.mxu0 %v493
    %497 = vmatprep.subr.bf16.mxu0 0
    %498 = vmatpush1.bf16.xpose.msra.mxu0 0
    %499 = vmatprep.subr.bf16.mxu0 0
    %500 = vmatpush1.bf16.xpose.msra.mxu0 0
    %501 = vmatprep.subr.bf16.mxu0 0
    %502 = vmatpush1.bf16.xpose.msra.mxu0 0
    %503 = vmatprep.subr.bf16.mxu0 0
    %504 = vmatpush1.bf16.xpose.msra.mxu0 0
    %505 = vmatprep.subr.bf16.mxu0 0
    %506 = vmatpush1.bf16.xpose.msra.mxu0 0
    %507 = vmatprep.subr.bf16.mxu0 0
    %508 = vmatpush1.bf16.xpose.msra.mxu0 0
    %509 = vmatprep.subr.bf16.mxu0 0
    %510 = vmatpush1.bf16.xpose.msra.mxu0 0
    %511 = vmatprep.subr.bf16.mxu0 0
    %512 = vmatpush1.bf16.xpose.msra.mxu0 0
    %513 = vmatprep.subr.bf16.mxu0 0
    %514 = vmatpush1.bf16.xpose.msra.mxu0 0
    %515 = vmatprep.subr.bf16.mxu0 0
    %516 = vmatpush1.bf16.xpose.msra.mxu0 0
    %517 = vmatprep.subr.bf16.mxu0 0
    %518 = vmatpush1.bf16.xpose.msra.mxu0 0
    %519 = vmatprep.subr.bf16.mxu0 0
    %520 = vmatpush1.bf16.xpose.msra.mxu0 0
    %521 = vmatprep.subr.bf16.mxu0 0
    %522 = vmatpush1.bf16.xpose.msra.mxu0 0
    %523 = vmatprep.subr.bf16.mxu0 0
    %524 = vmatpush1.bf16.xpose.msra.mxu0 0
    %525 = vmatprep.subr.bf16.mxu0 0
    %526 = vmatpush1.bf16.xpose.msra.mxu0 0
    %527 = vmatprep.mubr.bf16.mxu0 0
    %528 = vmatmul.mubr.bf16.gmra.mrb[0].mxu0 %v490
    %v529 = vpop.f32.mrb[0].mxu0
    %v530 = vadd.f32 %v235, %v529
    %v531 = vpop.f32.mrb[0].mxu0
    %v532 = vpop.f32.mrb[0].mxu0
    %v533 = vpop.f32.mrb[0].mxu0
    %534 = vdwg.mxu0
    %v535 = vunpack.c.l.b16 %v221
    %v536 = vpack.c.b16 %v535, %v535
    %537 = vrot.lane.b32.xlu0 %v536, 96
    %v538 = vpop.permute.xlu0 %537
    %v540 = vsel %vm240, %v221, 0
    %v543 = vsel %vm240, %v538, 0
    %545 = vmatprep.subr.bf16.mxu0 0
    %546 = vmatpush1.bf16.xpose.msra.mxu0 %v543
    %547 = vmatprep.subr.bf16.mxu0 0
    %548 = vmatpush1.bf16.xpose.msra.mxu0 0
    %549 = vmatprep.subr.bf16.mxu0 0
    %550 = vmatpush1.bf16.xpose.msra.mxu0 0
    %551 = vmatprep.subr.bf16.mxu0 0
    %552 = vmatpush1.bf16.xpose.msra.mxu0 0
    %553 = vmatprep.subr.bf16.mxu0 0
    %554 = vmatpush1.bf16.xpose.msra.mxu0 0
    %555 = vmatprep.subr.bf16.mxu0 0
    %556 = vmatpush1.bf16.xpose.msra.mxu0 0
    %557 = vmatprep.subr.bf16.mxu0 0
    %558 = vmatpush1.bf16.xpose.msra.mxu0 0
    %559 = vmatprep.subr.bf16.mxu0 0
    %560 = vmatpush1.bf16.xpose.msra.mxu0 0
    %561 = vmatprep.subr.bf16.mxu0 0
    %562 = vmatpush1.bf16.xpose.msra.mxu0 0
    %563 = vmatprep.subr.bf16.mxu0 0
    %564 = vmatpush1.bf16.xpose.msra.mxu0 0
    %565 = vmatprep.subr.bf16.mxu0 0
    %566 = vmatpush1.bf16.xpose.msra.mxu0 0
    %567 = vmatprep.subr.bf16.mxu0 0
    %568 = vmatpush1.bf16.xpose.msra.mxu0 0
    %569 = vmatprep.subr.bf16.mxu0 0
    %570 = vmatpush1.bf16.xpose.msra.mxu0 0
    %571 = vmatprep.subr.bf16.mxu0 0
    %572 = vmatpush1.bf16.xpose.msra.mxu0 0
    %573 = vmatprep.subr.bf16.mxu0 0
    %574 = vmatpush1.bf16.xpose.msra.mxu0 0
    %575 = vmatprep.subr.bf16.mxu0 0
    %576 = vmatpush1.bf16.xpose.msra.mxu0 0
    %577 = vmatprep.mubr.bf16.mxu0 0
    %578 = vmatmul.mubr.bf16.gmra.mrb[0].mxu0 %v540
    %v579 = vpop.f32.mrb[0].mxu0
    %v580 = vadd.f32 %v231, %v579
    %v581 = vpop.f32.mrb[0].mxu0
    %v582 = vpop.f32.mrb[0].mxu0
    %v583 = vpop.f32.mrb[0].mxu0
    %584 = vdwg.mxu0
    %v585 = vunpack.c.l.b16 %v223
    %v586 = vpack.c.b16 %v585, %v585
    %587 = vrot.lane.b32.xlu0 %v586, 96
    %v588 = vpop.permute.xlu0 %587
    %v590 = vsel %vm240, %v223, 0
    %v593 = vsel %vm240, %v588, 0
    %595 = vmatprep.subr.bf16.mxu0 0
    %596 = vmatpush1.bf16.xpose.msra.mxu0 %v593
    %597 = vmatprep.subr.bf16.mxu0 0
    %598 = vmatpush1.bf16.xpose.msra.mxu0 0
    %599 = vmatprep.subr.bf16.mxu0 0
    %600 = vmatpush1.bf16.xpose.msra.mxu0 0
    %601 = vmatprep.subr.bf16.mxu0 0
    %602 = vmatpush1.bf16.xpose.msra.mxu0 0
    %603 = vmatprep.subr.bf16.mxu0 0
    %604 = vmatpush1.bf16.xpose.msra.mxu0 0
    %605 = vmatprep.subr.bf16.mxu0 0
    %606 = vmatpush1.bf16.xpose.msra.mxu0 0
    %607 = vmatprep.subr.bf16.mxu0 0
    %608 = vmatpush1.bf16.xpose.msra.mxu0 0
    %609 = vmatprep.subr.bf16.mxu0 0
    %610 = vmatpush1.bf16.xpose.msra.mxu0 0
    %611 = vmatprep.subr.bf16.mxu0 0
    %612 = vmatpush1.bf16.xpose.msra.mxu0 0
    %613 = vmatprep.subr.bf16.mxu0 0
    %614 = vmatpush1.bf16.xpose.msra.mxu0 0
    %615 = vmatprep.subr.bf16.mxu0 0
    %616 = vmatpush1.bf16.xpose.msra.mxu0 0
    %617 = vmatprep.subr.bf16.mxu0 0
    %618 = vmatpush1.bf16.xpose.msra.mxu0 0
    %619 = vmatprep.subr.bf16.mxu0 0
    %620 = vmatpush1.bf16.xpose.msra.mxu0 0
    %621 = vmatprep.subr.bf16.mxu0 0
    %622 = vmatpush1.bf16.xpose.msra.mxu0 0
    %623 = vmatprep.subr.bf16.mxu0 0
    %624 = vmatpush1.bf16.xpose.msra.mxu0 0
    %625 = vmatprep.subr.bf16.mxu0 0
    %626 = vmatpush1.bf16.xpose.msra.mxu0 0
    %627 = vmatprep.mubr.bf16.mxu0 0
    %628 = vmatmul.mubr.bf16.gmra.mrb[0].mxu0 %v590
    %v629 = vpop.f32.mrb[0].mxu0
    %v630 = vadd.f32 %v235, %v629
    %v631 = vpop.f32.mrb[0].mxu0
    %v632 = vpop.f32.mrb[0].mxu0
    %v633 = vpop.f32.mrb[0].mxu0
    %634 = vdwg.mxu0
    %v635 = vsel %vm240, %v282, -inf
    %636 = vmax.xlane.f32.xlu0 %v635
    %v637 = vpop.xlane.xlu0 %636
    %v638 = vsel %vm240, %v330, -inf
    %639 = vmax.xlane.f32.xlu0 %v638
    %v640 = vpop.xlane.xlu0 %639
    %v641 = vsel %vm240, %v380, -inf
    %642 = vmax.xlane.f32.xlu0 %v641
    %v643 = vpop.xlane.xlu0 %642
    %v644 = vsel %vm240, %v430, -inf
    %645 = vmax.xlane.f32.xlu0 %v644
    %v646 = vpop.xlane.xlu0 %645
    %v647 = vsel %vm240, %v480, -inf
    %648 = vmax.xlane.f32.xlu0 %v647
    %v649 = vpop.xlane.xlu0 %648
    %v650 = vsel %vm240, %v530, -inf
    %651 = vmax.xlane.f32.xlu0 %v650
    %v652 = vpop.xlane.xlu0 %651
    %v653 = vsel %vm240, %v580, -inf
    %654 = vmax.xlane.f32.xlu0 %v653
    %v655 = vpop.xlane.xlu0 %654
    %v656 = vsel %vm240, %v630, -inf
    %657 = vmax.xlane.f32.xlu0 %v656
    %v658 = vpop.xlane.xlu0 %657
    %v659 = vsub.f32 %v282, %v637
    %v660 = vsub.f32 %v330, %v640
    %v661 = vsub.f32 %v380, %v643
    %v662 = vsub.f32 %v430, %v646
    %v663 = vsub.f32 %v480, %v649
    %v664 = vsub.f32 %v530, %v652
    %v665 = vsub.f32 %v580, %v655
    %v666 = vsub.f32 %v630, %v658
    %v667 = vmul.f32 %v659, 1.442695
    %v668 = vpow.pop %v667
    %v669 = vmul.f32 %v660, 1.442695
    %v670 = vpow.pop %v669
    %v671 = vmul.f32 %v661, 1.442695
    %v672 = vpow.pop %v671
    %v673 = vmul.f32 %v662, 1.442695
    %v674 = vpow.pop %v673
    %v675 = vmul.f32 %v663, 1.442695
    %v676 = vpow.pop %v675
    %v677 = vmul.f32 %v664, 1.442695
    %v678 = vpow.pop %v677
    %v679 = vmul.f32 %v665, 1.442695
    %v680 = vpow.pop %v679
    %v681 = vmul.f32 %v666, 1.442695
    %v682 = vpow.pop %v681
    %v683 = vsel %vm240, %v668, 0.0
    %684 = vadd.xlane.f32.xlu0 %v683
    %v685 = vpop.xlane.xlu0 %684
    %v686 = vsel %vm240, %v670, 0.0
    %687 = vadd.xlane.f32.xlu0 %v686
    %v688 = vpop.xlane.xlu0 %687
    %v689 = vsel %vm240, %v672, 0.0
    %690 = vadd.xlane.f32.xlu0 %v689
    %v691 = vpop.xlane.xlu0 %690
    %v692 = vsel %vm240, %v674, 0.0
    %693 = vadd.xlane.f32.xlu0 %v692
    %v694 = vpop.xlane.xlu0 %693
    %v695 = vsel %vm240, %v676, 0.0
    %696 = vadd.xlane.f32.xlu0 %v695
    %v697 = vpop.xlane.xlu0 %696
    %v698 = vsel %vm240, %v678, 0.0
    %699 = vadd.xlane.f32.xlu0 %v698
    %v700 = vpop.xlane.xlu0 %699
    %v701 = vsel %vm240, %v680, 0.0
    %702 = vadd.xlane.f32.xlu0 %v701
    %v703 = vpop.xlane.xlu0 %702
    %v704 = vsel %vm240, %v682, 0.0
    %705 = vadd.xlane.f32.xlu0 %v704
    %v706 = vpop.xlane.xlu0 %705
    %v707 = vrcp.pop %v685
    %v708 = vrcp.pop %v688
    %v709 = vrcp.pop %v691
    %v710 = vrcp.pop %v694
    %v711 = vrcp.pop %v697
    %v712 = vrcp.pop %v700
    %v713 = vrcp.pop %v703
    %v714 = vrcp.pop %v706
    %v715 = vmul.f32 %v668, %v707
    %v716 = vmul.f32 %v670, %v708
    %v717 = vmul.f32 %v672, %v709
    %v718 = vmul.f32 %v674, %v710
    %v719 = vmul.f32 %v676, %v711
    %v720 = vmul.f32 %v678, %v712
    %v721 = vmul.f32 %v680, %v713
    %v722 = vmul.f32 %v682, %v714
    %v723 = vpack.c.bf16 %v715, %v715
    %v724 = vpack.c.bf16 %v716, %v716
    %v725 = vpack.c.bf16 %v717, %v717
    %v726 = vpack.c.bf16 %v718, %v718
    %v727 = vpack.c.bf16 %v719, %v719
    %v728 = vpack.c.bf16 %v720, %v720
    %v729 = vpack.c.bf16 %v721, %v721
    %v730 = vpack.c.bf16 %v722, %v722
    %731 = vrot.lane.b32.xlu0 %v210, 64
    %v732 = vpop.permute.xlu0 %731
    %v734 = vsel %vm240, %v723, 0
    %vm736 = vcmask 1043456
    %v738 = vsel %vm736, %v732, 0
    %740 = vmatprep.subr.bf16.mxu0 0
    %741 = vmatpush1.bf16.msra.mxu0 %v738
    %742 = vmatprep.subr.bf16.mxu0 0
    %743 = vmatpush1.bf16.msra.mxu0 0
    %744 = vmatprep.subr.bf16.mxu0 0
    %745 = vmatpush1.bf16.msra.mxu0 0
    %746 = vmatprep.subr.bf16.mxu0 0
    %747 = vmatpush1.bf16.msra.mxu0 0
    %748 = vmatprep.subr.bf16.mxu0 0
    %749 = vmatpush1.bf16.msra.mxu0 0
    %750 = vmatprep.subr.bf16.mxu0 0
    %751 = vmatpush1.bf16.msra.mxu0 0
    %752 = vmatprep.subr.bf16.mxu0 0
    %753 = vmatpush1.bf16.msra.mxu0 0
    %754 = vmatprep.subr.bf16.mxu0 0
    %755 = vmatpush1.bf16.msra.mxu0 0
    %756 = vmatprep.subr.bf16.mxu0 0
    %757 = vmatpush1.bf16.msra.mxu0 0
    %758 = vmatprep.subr.bf16.mxu0 0
    %759 = vmatpush1.bf16.msra.mxu0 0
    %760 = vmatprep.subr.bf16.mxu0 0
    %761 = vmatpush1.bf16.msra.mxu0 0
    %762 = vmatprep.subr.bf16.mxu0 0
    %763 = vmatpush1.bf16.msra.mxu0 0
    %764 = vmatprep.subr.bf16.mxu0 0
    %765 = vmatpush1.bf16.msra.mxu0 0
    %766 = vmatprep.subr.bf16.mxu0 0
    %767 = vmatpush1.bf16.msra.mxu0 0
    %768 = vmatprep.subr.bf16.mxu0 0
    %769 = vmatpush1.bf16.msra.mxu0 0
    %770 = vmatprep.subr.bf16.mxu0 0
    %771 = vmatpush1.bf16.msra.mxu0 0
    %772 = vmatprep.mubr.bf16.mxu0 0
    %773 = vmatmul.mubr.bf16.gmra.mrb[0].mxu0 %v734
    %v774 = vpop.f32.mrb[0].mxu0
    %v775 = vadd.f32 0.0, %v774
    %v776 = vpop.f32.mrb[0].mxu0
    %v777 = vpop.f32.mrb[0].mxu0
    %v778 = vpop.f32.mrb[0].mxu0
    %779 = vdwg.mxu0
    %780 = vrot.lane.b32.xlu0 %v211, 64
    %v781 = vpop.permute.xlu0 %780
    %v783 = vsel %vm240, %v724, 0
    %v786 = vsel %vm736, %v781, 0
    %788 = vmatprep.subr.bf16.mxu0 0
    %789 = vmatpush1.bf16.msra.mxu0 %v786
    %790 = vmatprep.subr.bf16.mxu0 0
    %791 = vmatpush1.bf16.msra.mxu0 0
    %792 = vmatprep.subr.bf16.mxu0 0
    %793 = vmatpush1.bf16.msra.mxu0 0
    %794 = vmatprep.subr.bf16.mxu0 0
    %795 = vmatpush1.bf16.msra.mxu0 0
    %796 = vmatprep.subr.bf16.mxu0 0
    %797 = vmatpush1.bf16.msra.mxu0 0
    %798 = vmatprep.subr.bf16.mxu0 0
    %799 = vmatpush1.bf16.msra.mxu0 0
    %800 = vmatprep.subr.bf16.mxu0 0
    %801 = vmatpush1.bf16.msra.mxu0 0
    %802 = vmatprep.subr.bf16.mxu0 0
    %803 = vmatpush1.bf16.msra.mxu0 0
    %804 = vmatprep.subr.bf16.mxu0 0
    %805 = vmatpush1.bf16.msra.mxu0 0
    %806 = vmatprep.subr.bf16.mxu0 0
    %807 = vmatpush1.bf16.msra.mxu0 0
    %808 = vmatprep.subr.bf16.mxu0 0
    %809 = vmatpush1.bf16.msra.mxu0 0
    %810 = vmatprep.subr.bf16.mxu0 0
    %811 = vmatpush1.bf16.msra.mxu0 0
    %812 = vmatprep.subr.bf16.mxu0 0
    %813 = vmatpush1.bf16.msra.mxu0 0
    %814 = vmatprep.subr.bf16.mxu0 0
    %815 = vmatpush1.bf16.msra.mxu0 0
    %816 = vmatprep.subr.bf16.mxu0 0
    %817 = vmatpush1.bf16.msra.mxu0 0
    %818 = vmatprep.subr.bf16.mxu0 0
    %819 = vmatpush1.bf16.msra.mxu0 0
    %820 = vmatprep.mubr.bf16.mxu0 0
    %821 = vmatmul.mubr.bf16.gmra.mrb[0].mxu0 %v783
    %v822 = vpop.f32.mrb[0].mxu0
    %v823 = vadd.f32 0.0, %v822
    %v824 = vpop.f32.mrb[0].mxu0
    %v825 = vpop.f32.mrb[0].mxu0
    %v826 = vpop.f32.mrb[0].mxu0
    %827 = vdwg.mxu0
    %828 = vrot.lane.b32.xlu0 %v336, 64
    %v829 = vpop.permute.xlu0 %828
    %v831 = vsel %vm240, %v725, 0
    %v834 = vsel %vm736, %v829, 0
    %836 = vmatprep.subr.bf16.mxu0 0
    %837 = vmatpush1.bf16.msra.mxu0 %v834
    %838 = vmatprep.subr.bf16.mxu0 0
    %839 = vmatpush1.bf16.msra.mxu0 0
    %840 = vmatprep.subr.bf16.mxu0 0
    %841 = vmatpush1.bf16.msra.mxu0 0
    %842 = vmatprep.subr.bf16.mxu0 0
    %843 = vmatpush1.bf16.msra.mxu0 0
    %844 = vmatprep.subr.bf16.mxu0 0
    %845 = vmatpush1.bf16.msra.mxu0 0
    %846 = vmatprep.subr.bf16.mxu0 0
    %847 = vmatpush1.bf16.msra.mxu0 0
    %848 = vmatprep.subr.bf16.mxu0 0
    %849 = vmatpush1.bf16.msra.mxu0 0
    %850 = vmatprep.subr.bf16.mxu0 0
    %851 = vmatpush1.bf16.msra.mxu0 0
    %852 = vmatprep.subr.bf16.mxu0 0
    %853 = vmatpush1.bf16.msra.mxu0 0
    %854 = vmatprep.subr.bf16.mxu0 0
    %855 = vmatpush1.bf16.msra.mxu0 0
    %856 = vmatprep.subr.bf16.mxu0 0
    %857 = vmatpush1.bf16.msra.mxu0 0
    %858 = vmatprep.subr.bf16.mxu0 0
    %859 = vmatpush1.bf16.msra.mxu0 0
    %860 = vmatprep.subr.bf16.mxu0 0
    %861 = vmatpush1.bf16.msra.mxu0 0
    %862 = vmatprep.subr.bf16.mxu0 0
    %863 = vmatpush1.bf16.msra.mxu0 0
    %864 = vmatprep.subr.bf16.mxu0 0
    %865 = vmatpush1.bf16.msra.mxu0 0
    %866 = vmatprep.subr.bf16.mxu0 0
    %867 = vmatpush1.bf16.msra.mxu0 0
    %868 = vmatprep.mubr.bf16.mxu0 0
    %869 = vmatmul.mubr.bf16.gmra.mrb[0].mxu0 %v831
    %v870 = vpop.f32.mrb[0].mxu0
    %v871 = vadd.f32 0.0, %v870
    %v872 = vpop.f32.mrb[0].mxu0
    %v873 = vpop.f32.mrb[0].mxu0
    %v874 = vpop.f32.mrb[0].mxu0
    %875 = vdwg.mxu0
    %876 = vrot.lane.b32.xlu0 %v386, 64
    %v877 = vpop.permute.xlu0 %876
    %v879 = vsel %vm240, %v726, 0
    %v882 = vsel %vm736, %v877, 0
    %884 = vmatprep.subr.bf16.mxu0 0
    %885 = vmatpush1.bf16.msra.mxu0 %v882
    %886 = vmatprep.subr.bf16.mxu0 0
    %887 = vmatpush1.bf16.msra.mxu0 0
    %888 = vmatprep.subr.bf16.mxu0 0
    %889 = vmatpush1.bf16.msra.mxu0 0
    %890 = vmatprep.subr.bf16.mxu0 0
    %891 = vmatpush1.bf16.msra.mxu0 0
    %892 = vmatprep.subr.bf16.mxu0 0
    %893 = vmatpush1.bf16.msra.mxu0 0
    %894 = vmatprep.subr.bf16.mxu0 0
    %895 = vmatpush1.bf16.msra.mxu0 0
    %896 = vmatprep.subr.bf16.mxu0 0
    %897 = vmatpush1.bf16.msra.mxu0 0
    %898 = vmatprep.subr.bf16.mxu0 0
    %899 = vmatpush1.bf16.msra.mxu0 0
    %900 = vmatprep.subr.bf16.mxu0 0
    %901 = vmatpush1.bf16.msra.mxu0 0
    %902 = vmatprep.subr.bf16.mxu0 0
    %903 = vmatpush1.bf16.msra.mxu0 0
    %904 = vmatprep.subr.bf16.mxu0 0
    %905 = vmatpush1.bf16.msra.mxu0 0
    %906 = vmatprep.subr.bf16.mxu0 0
    %907 = vmatpush1.bf16.msra.mxu0 0
    %908 = vmatprep.subr.bf16.mxu0 0
    %909 = vmatpush1.bf16.msra.mxu0 0
    %910 = vmatprep.subr.bf16.mxu0 0
    %911 = vmatpush1.bf16.msra.mxu0 0
    %912 = vmatprep.subr.bf16.mxu0 0
    %913 = vmatpush1.bf16.msra.mxu0 0
    %914 = vmatprep.subr.bf16.mxu0 0
    %915 = vmatpush1.bf16.msra.mxu0 0
    %916 = vmatprep.mubr.bf16.mxu0 0
    %917 = vmatmul.mubr.bf16.gmra.mrb[0].mxu0 %v879
    %v918 = vpop.f32.mrb[0].mxu0
    %v919 = vadd.f32 0.0, %v918
    %v920 = vpop.f32.mrb[0].mxu0
    %v921 = vpop.f32.mrb[0].mxu0
    %v922 = vpop.f32.mrb[0].mxu0
    %923 = vdwg.mxu0
    %924 = vrot.lane.b32.xlu0 %v436, 64
    %v925 = vpop.permute.xlu0 %924
    %v927 = vsel %vm240, %v727, 0
    %v930 = vsel %vm736, %v925, 0
    %932 = vmatprep.subr.bf16.mxu0 0
    %933 = vmatpush1.bf16.msra.mxu0 %v930
    %934 = vmatprep.subr.bf16.mxu0 0
    %935 = vmatpush1.bf16.msra.mxu0 0
    %936 = vmatprep.subr.bf16.mxu0 0
    %937 = vmatpush1.bf16.msra.mxu0 0
    %938 = vmatprep.subr.bf16.mxu0 0
    %939 = vmatpush1.bf16.msra.mxu0 0
    %940 = vmatprep.subr.bf16.mxu0 0
    %941 = vmatpush1.bf16.msra.mxu0 0
    %942 = vmatprep.subr.bf16.mxu0 0
    %943 = vmatpush1.bf16.msra.mxu0 0
    %944 = vmatprep.subr.bf16.mxu0 0
    %945 = vmatpush1.bf16.msra.mxu0 0
    %946 = vmatprep.subr.bf16.mxu0 0
    %947 = vmatpush1.bf16.msra.mxu0 0
    %948 = vmatprep.subr.bf16.mxu0 0
    %949 = vmatpush1.bf16.msra.mxu0 0
    %950 = vmatprep.subr.bf16.mxu0 0
    %951 = vmatpush1.bf16.msra.mxu0 0
    %952 = vmatprep.subr.bf16.mxu0 0
    %953 = vmatpush1.bf16.msra.mxu0 0
    %954 = vmatprep.subr.bf16.mxu0 0
    %955 = vmatpush1.bf16.msra.mxu0 0
    %956 = vmatprep.subr.bf16.mxu0 0
    %957 = vmatpush1.bf16.msra.mxu0 0
    %958 = vmatprep.subr.bf16.mxu0 0
    %959 = vmatpush1.bf16.msra.mxu0 0
    %960 = vmatprep.subr.bf16.mxu0 0
    %961 = vmatpush1.bf16.msra.mxu0 0
    %962 = vmatprep.subr.bf16.mxu0 0
    %963 = vmatpush1.bf16.msra.mxu0 0
    %964 = vmatprep.mubr.bf16.mxu0 0
    %965 = vmatmul.mubr.bf16.gmra.mrb[0].mxu0 %v927
    %v966 = vpop.f32.mrb[0].mxu0
    %v967 = vadd.f32 0.0, %v966
    %v968 = vpop.f32.mrb[0].mxu0
    %v969 = vpop.f32.mrb[0].mxu0
    %v970 = vpop.f32.mrb[0].mxu0
    %971 = vdwg.mxu0
    %972 = vrot.lane.b32.xlu0 %v486, 64
    %v973 = vpop.permute.xlu0 %972
    %v975 = vsel %vm240, %v728, 0
    %v978 = vsel %vm736, %v973, 0
    %980 = vmatprep.subr.bf16.mxu0 0
    %981 = vmatpush1.bf16.msra.mxu0 %v978
    %982 = vmatprep.subr.bf16.mxu0 0
    %983 = vmatpush1.bf16.msra.mxu0 0
    %984 = vmatprep.subr.bf16.mxu0 0
    %985 = vmatpush1.bf16.msra.mxu0 0
    %986 = vmatprep.subr.bf16.mxu0 0
    %987 = vmatpush1.bf16.msra.mxu0 0
    %988 = vmatprep.subr.bf16.mxu0 0
    %989 = vmatpush1.bf16.msra.mxu0 0
    %990 = vmatprep.subr.bf16.mxu0 0
    %991 = vmatpush1.bf16.msra.mxu0 0
    %992 = vmatprep.subr.bf16.mxu0 0
    %993 = vmatpush1.bf16.msra.mxu0 0
    %994 = vmatprep.subr.bf16.mxu0 0
    %995 = vmatpush1.bf16.msra.mxu0 0
    %996 = vmatprep.subr.bf16.mxu0 0
    %997 = vmatpush1.bf16.msra.mxu0 0
    %998 = vmatprep.subr.bf16.mxu0 0
    %999 = vmatpush1.bf16.msra.mxu0 0
    %1000 = vmatprep.subr.bf16.mxu0 0
    %1001 = vmatpush1.bf16.msra.mxu0 0
    %1002 = vmatprep.subr.bf16.mxu0 0
    %1003 = vmatpush1.bf16.msra.mxu0 0
    %1004 = vmatprep.subr.bf16.mxu0 0
    %1005 = vmatpush1.bf16.msra.mxu0 0
    %1006 = vmatprep.subr.bf16.mxu0 0
    %1007 = vmatpush1.bf16.msra.mxu0 0
    %1008 = vmatprep.subr.bf16.mxu0 0
    %1009 = vmatpush1.bf16.msra.mxu0 0
    %1010 = vmatprep.subr.bf16.mxu0 0
    %1011 = vmatpush1.bf16.msra.mxu0 0
    %1012 = vmatprep.mubr.bf16.mxu0 0
    %1013 = vmatmul.mubr.bf16.gmra.mrb[0].mxu0 %v975
    %v1014 = vpop.f32.mrb[0].mxu0
    %v1015 = vadd.f32 0.0, %v1014
    %v1016 = vpop.f32.mrb[0].mxu0
    %v1017 = vpop.f32.mrb[0].mxu0
    %v1018 = vpop.f32.mrb[0].mxu0
    %1019 = vdwg.mxu0
    %1020 = vrot.lane.b32.xlu0 %v536, 64
    %v1021 = vpop.permute.xlu0 %1020
    %v1023 = vsel %vm240, %v729, 0
    %v1026 = vsel %vm736, %v1021, 0
    %1028 = vmatprep.subr.bf16.mxu0 0
    %1029 = vmatpush1.bf16.msra.mxu0 %v1026
    %1030 = vmatprep.subr.bf16.mxu0 0
    %1031 = vmatpush1.bf16.msra.mxu0 0
    %1032 = vmatprep.subr.bf16.mxu0 0
    %1033 = vmatpush1.bf16.msra.mxu0 0
    %1034 = vmatprep.subr.bf16.mxu0 0
    %1035 = vmatpush1.bf16.msra.mxu0 0
    %1036 = vmatprep.subr.bf16.mxu0 0
    %1037 = vmatpush1.bf16.msra.mxu0 0
    %1038 = vmatprep.subr.bf16.mxu0 0
    %1039 = vmatpush1.bf16.msra.mxu0 0
    %1040 = vmatprep.subr.bf16.mxu0 0
    %1041 = vmatpush1.bf16.msra.mxu0 0
    %1042 = vmatprep.subr.bf16.mxu0 0
    %1043 = vmatpush1.bf16.msra.mxu0 0
    %1044 = vmatprep.subr.bf16.mxu0 0
    %1045 = vmatpush1.bf16.msra.mxu0 0
    %1046 = vmatprep.subr.bf16.mxu0 0
    %1047 = vmatpush1.bf16.msra.mxu0 0
    %1048 = vmatprep.subr.bf16.mxu0 0
    %1049 = vmatpush1.bf16.msra.mxu0 0
    %1050 = vmatprep.subr.bf16.mxu0 0
    %1051 = vmatpush1.bf16.msra.mxu0 0
    %1052 = vmatprep.subr.bf16.mxu0 0
    %1053 = vmatpush1.bf16.msra.mxu0 0
    %1054 = vmatprep.subr.bf16.mxu0 0
    %1055 = vmatpush1.bf16.msra.mxu0 0
    %1056 = vmatprep.subr.bf16.mxu0 0
    %1057 = vmatpush1.bf16.msra.mxu0 0
    %1058 = vmatprep.subr.bf16.mxu0 0
    %1059 = vmatpush1.bf16.msra.mxu0 0
    %1060 = vmatprep.mubr.bf16.mxu0 0
    %1061 = vmatmul.mubr.bf16.gmra.mrb[0].mxu0 %v1023
    %v1062 = vpop.f32.mrb[0].mxu0
    %v1063 = vadd.f32 0.0, %v1062
    %v1064 = vpop.f32.mrb[0].mxu0
    %v1065 = vpop.f32.mrb[0].mxu0
    %v1066 = vpop.f32.mrb[0].mxu0
    %1067 = vdwg.mxu0
    %1068 = vrot.lane.b32.xlu0 %v586, 64
    %v1069 = vpop.permute.xlu0 %1068
    %v1071 = vsel %vm240, %v730, 0
    %v1074 = vsel %vm736, %v1069, 0
    %1076 = vmatprep.subr.bf16.mxu0 0
    %1077 = vmatpush1.bf16.msra.mxu0 %v1074
    %1078 = vmatprep.subr.bf16.mxu0 0
    %1079 = vmatpush1.bf16.msra.mxu0 0
    %1080 = vmatprep.subr.bf16.mxu0 0
    %1081 = vmatpush1.bf16.msra.mxu0 0
    %1082 = vmatprep.subr.bf16.mxu0 0
    %1083 = vmatpush1.bf16.msra.mxu0 0
    %1084 = vmatprep.subr.bf16.mxu0 0
    %1085 = vmatpush1.bf16.msra.mxu0 0
    %1086 = vmatprep.subr.bf16.mxu0 0
    %1087 = vmatpush1.bf16.msra.mxu0 0
    %1088 = vmatprep.subr.bf16.mxu0 0
    %1089 = vmatpush1.bf16.msra.mxu0 0
    %1090 = vmatprep.subr.bf16.mxu0 0
    %1091 = vmatpush1.bf16.msra.mxu0 0
    %1092 = vmatprep.subr.bf16.mxu0 0
    %1093 = vmatpush1.bf16.msra.mxu0 0
    %1094 = vmatprep.subr.bf16.mxu0 0
    %1095 = vmatpush1.bf16.msra.mxu0 0
    %1096 = vmatprep.subr.bf16.mxu0 0
    %1097 = vmatpush1.bf16.msra.mxu0 0
    %1098 = vmatprep.subr.bf16.mxu0 0
    %1099 = vmatpush1.bf16.msra.mxu0 0
    %1100 = vmatprep.subr.bf16.mxu0 0
    %1101 = vmatpush1.bf16.msra.mxu0 0
    %1102 = vmatprep.subr.bf16.mxu0 0
    %1103 = vmatpush1.bf16.msra.mxu0 0
    %1104 = vmatprep.subr.bf16.mxu0 0
    %1105 = vmatpush1.bf16.msra.mxu0 0
    %1106 = vmatprep.subr.bf16.mxu0 0
    %1107 = vmatpush1.bf16.msra.mxu0 0
    %1108 = vmatprep.mubr.bf16.mxu0 0
    %1109 = vmatmul.mubr.bf16.gmra.mrb[0].mxu0 %v1071
    %v1110 = vpop.f32.mrb[0].mxu0
    %v1111 = vadd.f32 0.0, %v1110
    %v1112 = vpop.f32.mrb[0].mxu0
    %v1113 = vpop.f32.mrb[0].mxu0
    %v1114 = vpop.f32.mrb[0].mxu0
    %1115 = vdwg.mxu0
    %1118 = vrot.lane.b32.xlu0 %v871, 8
    %v1119 = vpop.permute.xlu0 %1118
    %1120 = vrot.lane.b32.xlu0 %v919, 8
    %v1121 = vpop.permute.xlu0 %1120
    %1126 = vrot.lane.b32.xlu0 %v967, 16
    %v1127 = vpop.permute.xlu0 %1126
    %1128 = vrot.lane.b32.xlu0 %v1015, 16
    %v1129 = vpop.permute.xlu0 %1128
    %1134 = vrot.lane.b32.xlu0 %v1063, 24
    %v1135 = vpop.permute.xlu0 %1134
    %1136 = vrot.lane.b32.xlu0 %v1111, 24
    %v1137 = vpop.permute.xlu0 %1136
    %v1140 = vsel %vm240, %v775, %v1119
    %v1141 = vsel %vm240, %v823, %v1121
    %vm1142 = vcmask 130048
    %v1143 = vsel %vm1142, %v1140, %v1127
    %v1144 = vsel %vm1142, %v1141, %v1129
    %vm1145 = vcmask 195584
    %v1146 = vsel %vm1145, %v1143, %v1135
    %v1147 = vsel %vm1145, %v1144, %v1137
    %v1148 = vpack.c.bf16 %v1147, %v1146
    %v1149 = vld [vmem:[%s6] sm:$0xf]
    %v1150 = vld [vmem:[%s6 + $0x4] sm:$0xf]
    %v1151 = vld [vmem:[%s6 + $0x8] sm:$0xf]
    %v1152 = vld [vmem:[%s6 + $0xc] sm:$0xf]
    %v1153 = vld [vmem:[%s7] sm:$0x1]
    %v1155 = vlaneseq
    %v1156 = vshrl.u32 %v1155, 7
    %v1157 = vsub.s32 0, %v1156
    %v1158 = vrot.slane %v1153, %v1157
    %v1164 = vunpack.c.l.b16 %v1149
    %v1165 = vunpack.c.l.b16 %v1150
    %v1166 = vunpack.c.l.b16 %v1151
    %v1167 = vunpack.c.l.b16 %v1152
    %v1168 = vpack.c.b16 %v1165, %v1164
    %v1169 = vpack.c.b16 %v1167, %v1166
    %v1173 = vsel %vm73, %v1148, 0
    %1175 = vmatprep.subr.bf16.mxu0 0
    %1176 = vmatpush1.bf16.msra.mxu0 %v1168
    %1177 = vmatprep.subr.bf16.mxu0 0
    %1178 = vmatpush1.bf16.msra.mxu0 %v1169
    %1179 = vmatprep.subr.bf16.mxu0 0
    %1180 = vmatpush1.bf16.msra.mxu0 0
    %1181 = vmatprep.subr.bf16.mxu0 0
    %1182 = vmatpush1.bf16.msra.mxu0 0
    %1183 = vmatprep.subr.bf16.mxu0 0
    %1184 = vmatpush1.bf16.msra.mxu0 0
    %1185 = vmatprep.subr.bf16.mxu0 0
    %1186 = vmatpush1.bf16.msra.mxu0 0
    %1187 = vmatprep.subr.bf16.mxu0 0
    %1188 = vmatpush1.bf16.msra.mxu0 0
    %1189 = vmatprep.subr.bf16.mxu0 0
    %1190 = vmatpush1.bf16.msra.mxu0 0
    %1191 = vmatprep.subr.bf16.mxu0 0
    %1192 = vmatpush1.bf16.msra.mxu0 0
    %1193 = vmatprep.subr.bf16.mxu0 0
    %1194 = vmatpush1.bf16.msra.mxu0 0
    %1195 = vmatprep.subr.bf16.mxu0 0
    %1196 = vmatpush1.bf16.msra.mxu0 0
    %1197 = vmatprep.subr.bf16.mxu0 0
    %1198 = vmatpush1.bf16.msra.mxu0 0
    %1199 = vmatprep.subr.bf16.mxu0 0
    %1200 = vmatpush1.bf16.msra.mxu0 0
    %1201 = vmatprep.subr.bf16.mxu0 0
    %1202 = vmatpush1.bf16.msra.mxu0 0
    %1203 = vmatprep.subr.bf16.mxu0 0
    %1204 = vmatpush1.bf16.msra.mxu0 0
    %1205 = vmatprep.subr.bf16.mxu0 0
    %1206 = vmatpush1.bf16.msra.mxu0 0
    %1207 = vmatprep.mubr.bf16.mxu0 0
    %1208 = vmatmul.mubr.bf16.gmra.mrb[0].mxu0 %v1173
    %v1209 = vpop.f32.mrb[0].mxu0
    %v1210 = vadd.f32 %v1158, %v1209
    %v1211 = vpop.f32.mrb[0].mxu0
    %v1212 = vpop.f32.mrb[0].mxu0
    %v1213 = vadd.f32 %v1158, %v1212
    %v1214 = vpop.f32.mrb[0].mxu0
    %1215 = vdwg.mxu0
    %v1216 = vadd.f32 %v69, %v1210
    %v1217 = vadd.f32 %v70, %v1213
    %v1218 = vld [vmem:[%s8] sm:$0x1]
    %v1219 = vld [vmem:[%s9] sm:$0x1]
    %v1220 = vsel %vm73, %v1216, 0.0
    %1221 = vadd.xlane.f32.xlu0 %v1220
    %v1222 = vpop.xlane.xlu0 %1221
    %v1223 = vsel %vm73, %v1217, 0.0
    %1224 = vadd.xlane.f32.xlu0 %v1223
    %v1225 = vpop.xlane.xlu0 %1224
    %v1226 = vmul.f32 %v1216, %v1216
    %v1227 = vmul.f32 %v1217, %v1217
    %v1228 = vsel %vm73, %v1226, 0.0
    %1229 = vadd.xlane.f32.xlu0 %v1228
    %v1230 = vpop.xlane.xlu0 %1229
    %v1231 = vsel %vm73, %v1227, 0.0
    %1232 = vadd.xlane.f32.xlu0 %v1231
    %v1233 = vpop.xlane.xlu0 %1232
    %v1234 = vmul.f32 %v1222, 0.03125
    %v1235 = vmul.f32 %v1225, 0.03125
    %v1236 = vmul.f32 %v1234, 32.0
    %v1237 = vmul.f32 %v1235, 32.0
    %v1238 = vmul.f32 %v1236, %v1234
    %v1239 = vmul.f32 %v1237, %v1235
    %v1240 = vsub.f32 %v1230, %v1238
    %v1241 = vsub.f32 %v1233, %v1239
    %v1242 = vmul.f32 %v1240, 0.032258064
    %v1243 = vmul.f32 %v1241, 0.032258064
    %v1244 = vmax.f32 %v1242, 0.0
    %v1245 = vmax.f32 %v1243, 0.0
    %v1246 = vrsqrt.pop %v1244
    %v1247 = vmul.f32 %v1244, %v1246
    %vm1248 = vcmp.eq.f32.partialorder %v1244, inf
    %v1249 = vsel %vm1248, %v1244, %v1247
    %vm1250 = vcmp.eq.f32.partialorder %v1244, 0.0
    %v1251 = vand.u32 %v1244, 2147483648
    %v1252 = vsel %vm1250, %v1251, %v1249
    %v1253 = vrsqrt.pop %v1245
    %v1254 = vmul.f32 %v1245, %v1253
    %vm1255 = vcmp.eq.f32.partialorder %v1245, inf
    %v1256 = vsel %vm1255, %v1245, %v1254
    %vm1257 = vcmp.eq.f32.partialorder %v1245, 0.0
    %v1258 = vand.u32 %v1245, 2147483648
    %v1259 = vsel %vm1257, %v1258, %v1256
    %v1260 = vadd.f32 %v1252, 1e-06
    %v1261 = vadd.f32 %v1259, 1e-06
    %v1262 = vrcp.pop %v1260
    %v1263 = vrcp.pop %v1261
    %v1264 = vsub.f32 %v1216, %v1234
    %v1265 = vsub.f32 %v1217, %v1235
    %v1267 = vlaneseq
    %v1268 = vshrl.u32 %v1267, 7
    %v1269 = vsub.s32 0, %v1268
    %v1270 = vrot.slane %v1218, %v1269
    %v1272 = vmul.f32 %v1270, %v1264
    %v1273 = vmul.f32 %v1270, %v1265
    %v1274 = vmul.f32 %v1272, %v1262
    %v1275 = vmul.f32 %v1273, %v1263
    %v1277 = vlaneseq
    %v1278 = vshrl.u32 %v1277, 7
    %v1279 = vsub.s32 0, %v1278
    %v1280 = vrot.slane %v1219, %v1279
    %v1282 = vadd.f32 %v1274, %v1280
    %v1283 = vadd.f32 %v1275, %v1280
    %v1284 = vpack.c.bf16 %v1283, %v1282
    %v1285 = vld [vmem:[%s10] sm:$0xf]
    %v1286 = vld [vmem:[%s10 + $0x4] sm:$0xf]
    %v1287 = vld [vmem:[%s10 + $0x8] sm:$0xf]
    %v1288 = vld [vmem:[%s10 + $0xc] sm:$0xf]
    %v1289 = vld [vmem:[%s11] sm:$0x1]
    %v1291 = vlaneseq
    %v1292 = vshrl.u32 %v1291, 7
    %v1293 = vsub.s32 0, %v1292
    %v1294 = vrot.slane %v1289, %v1293
    %v1300 = vunpack.c.l.b16 %v1285
    %v1301 = vunpack.c.l.b16 %v1286
    %v1302 = vunpack.c.l.b16 %v1287
    %v1303 = vunpack.c.l.b16 %v1288
    %v1304 = vpack.c.b16 %v1301, %v1300
    %v1305 = vpack.c.b16 %v1303, %v1302
    %v1309 = vsel %vm73, %v1284, 0
    %1311 = vmatprep.subr.bf16.mxu0 0
    %1312 = vmatpush1.bf16.msra.mxu0 %v1304
    %1313 = vmatprep.subr.bf16.mxu0 0
    %1314 = vmatpush1.bf16.msra.mxu0 %v1305
    %1315 = vmatprep.subr.bf16.mxu0 0
    %1316 = vmatpush1.bf16.msra.mxu0 0
    %1317 = vmatprep.subr.bf16.mxu0 0
    %1318 = vmatpush1.bf16.msra.mxu0 0
    %1319 = vmatprep.subr.bf16.mxu0 0
    %1320 = vmatpush1.bf16.msra.mxu0 0
    %1321 = vmatprep.subr.bf16.mxu0 0
    %1322 = vmatpush1.bf16.msra.mxu0 0
    %1323 = vmatprep.subr.bf16.mxu0 0
    %1324 = vmatpush1.bf16.msra.mxu0 0
    %1325 = vmatprep.subr.bf16.mxu0 0
    %1326 = vmatpush1.bf16.msra.mxu0 0
    %1327 = vmatprep.subr.bf16.mxu0 0
    %1328 = vmatpush1.bf16.msra.mxu0 0
    %1329 = vmatprep.subr.bf16.mxu0 0
    %1330 = vmatpush1.bf16.msra.mxu0 0
    %1331 = vmatprep.subr.bf16.mxu0 0
    %1332 = vmatpush1.bf16.msra.mxu0 0
    %1333 = vmatprep.subr.bf16.mxu0 0
    %1334 = vmatpush1.bf16.msra.mxu0 0
    %1335 = vmatprep.subr.bf16.mxu0 0
    %1336 = vmatpush1.bf16.msra.mxu0 0
    %1337 = vmatprep.subr.bf16.mxu0 0
    %1338 = vmatpush1.bf16.msra.mxu0 0
    %1339 = vmatprep.subr.bf16.mxu0 0
    %1340 = vmatpush1.bf16.msra.mxu0 0
    %1341 = vmatprep.subr.bf16.mxu0 0
    %1342 = vmatpush1.bf16.msra.mxu0 0
    %1343 = vmatprep.mubr.bf16.mxu0 0
    %1344 = vmatmul.mubr.bf16.gmra.mrb[0].mxu0 %v1309
    %v1345 = vpop.f32.mrb[0].mxu0
    %v1346 = vadd.f32 %v1294, %v1345
    %v1347 = vpop.f32.mrb[0].mxu0
    %v1348 = vpop.f32.mrb[0].mxu0
    %v1349 = vadd.f32 %v1294, %v1348
    %v1350 = vpop.f32.mrb[0].mxu0
    %1351 = vdwg.mxu0
    %v1352 = vmax.f32 %v1346, 0.0
    %v1353 = vmax.f32 %v1349, 0.0
    %v1354 = vpack.c.bf16 %v1353, %v1352
    %v1355 = vld [vmem:[%s12] sm:$0xf]
    %v1356 = vld [vmem:[%s12 + $0x4] sm:$0xf]
    %v1357 = vld [vmem:[%s12 + $0x8] sm:$0xf]
    %v1358 = vld [vmem:[%s12 + $0xc] sm:$0xf]
    %v1359 = vld [vmem:[%s12 + $0x10] sm:$0xf]
    %v1360 = vld [vmem:[%s12 + $0x14] sm:$0xf]
    %v1361 = vld [vmem:[%s12 + $0x18] sm:$0xf]
    %v1362 = vld [vmem:[%s12 + $0x1c] sm:$0xf]
    %v1363 = vld [vmem:[%s13] sm:$0x1]
    %v1365 = vlaneseq
    %v1366 = vshrl.u32 %v1365, 7
    %v1367 = vsub.s32 0, %v1366
    %v1368 = vrot.slane %v1363, %v1367
    %v1378 = vunpack.c.l.b16 %v1355
    %v1379 = vunpack.c.l.b16 %v1356
    %v1380 = vunpack.c.l.b16 %v1357
    %v1381 = vunpack.c.l.b16 %v1358
    %v1382 = vunpack.c.l.b16 %v1359
    %v1383 = vunpack.c.l.b16 %v1360
    %v1384 = vunpack.c.l.b16 %v1361
    %v1385 = vunpack.c.l.b16 %v1362
    %v1386 = vpack.c.b16 %v1379, %v1378
    %v1387 = vpack.c.b16 %v1381, %v1380
    %v1388 = vpack.c.b16 %v1383, %v1382
    %v1389 = vpack.c.b16 %v1385, %v1384
    %vm1394 = vcmask 523264
    %v1396 = vsel %vm1394, %v1354, 0
    %1398 = vmatprep.subr.bf16.mxu0 0
    %1399 = vmatpush1.bf16.msra.mxu0 %v1386
    %1400 = vmatprep.subr.bf16.mxu0 0
    %1401 = vmatpush1.bf16.msra.mxu0 %v1387
    %1402 = vmatprep.subr.bf16.mxu0 0
    %1403 = vmatpush1.bf16.msra.mxu0 %v1388
    %1404 = vmatprep.subr.bf16.mxu0 0
    %1405 = vmatpush1.bf16.msra.mxu0 %v1389
    %1406 = vmatprep.subr.bf16.mxu0 0
    %1407 = vmatpush1.bf16.msra.mxu0 0
    %1408 = vmatprep.subr.bf16.mxu0 0
    %1409 = vmatpush1.bf16.msra.mxu0 0
    %1410 = vmatprep.subr.bf16.mxu0 0
    %1411 = vmatpush1.bf16.msra.mxu0 0
    %1412 = vmatprep.subr.bf16.mxu0 0
    %1413 = vmatpush1.bf16.msra.mxu0 0
    %1414 = vmatprep.subr.bf16.mxu0 0
    %1415 = vmatpush1.bf16.msra.mxu0 0
    %1416 = vmatprep.subr.bf16.mxu0 0
    %1417 = vmatpush1.bf16.msra.mxu0 0
    %1418 = vmatprep.subr.bf16.mxu0 0
    %1419 = vmatpush1.bf16.msra.mxu0 0
    %1420 = vmatprep.subr.bf16.mxu0 0
    %1421 = vmatpush1.bf16.msra.mxu0 0
    %1422 = vmatprep.subr.bf16.mxu0 0
    %1423 = vmatpush1.bf16.msra.mxu0 0
    %1424 = vmatprep.subr.bf16.mxu0 0
    %1425 = vmatpush1.bf16.msra.mxu0 0
    %1426 = vmatprep.subr.bf16.mxu0 0
    %1427 = vmatpush1.bf16.msra.mxu0 0
    %1428 = vmatprep.subr.bf16.mxu0 0
    %1429 = vmatpush1.bf16.msra.mxu0 0
    %1430 = vmatprep.mubr.bf16.mxu0 0
    %1431 = vmatmul.mubr.bf16.gmra.mrb[0].mxu0 %v1396
    %v1432 = vpop.f32.mrb[0].mxu0
    %v1433 = vadd.f32 %v1368, %v1432
    %v1434 = vpop.f32.mrb[0].mxu0
    %v1435 = vpop.f32.mrb[0].mxu0
    %v1436 = vadd.f32 %v1368, %v1435
    %v1437 = vpop.f32.mrb[0].mxu0
    %1438 = vdwg.mxu0
    %v1439 = vadd.f32 %v1216, %v1433
    %v1440 = vadd.f32 %v1217, %v1436
    %v1441 = vld [vmem:[%s14] sm:$0x1]
    %v1442 = vld [vmem:[%s15] sm:$0x1]
    %v1445 = vrot.slane %v1440, 7
    %vm1446 = vcmask 1041409
    %v1447 = vsel %vm1446, %v1445, %v1439
    %vm1449 = vcmask 254976
    %v1450 = vsel %vm1449, %v1447, 0.0
    %1451 = vadd.xlane.f32.xlu0 %v1450
    %v1452 = vpop.xlane.xlu0 %1451
    %v1453 = vmul.f32 %v1439, %v1439
    %v1454 = vmul.f32 %v1440, %v1440
    %v1457 = vrot.slane %v1454, 7
    %v1458 = vsel %vm1446, %v1457, %v1453
    %v1460 = vsel %vm1449, %v1458, 0.0
    %1461 = vadd.xlane.f32.xlu0 %v1460
    %v1462 = vpop.xlane.xlu0 %1461
    %v1463 = vmul.f32 %v1452, 0.03125
    %v1464 = vmul.f32 %v1463, 32.0
    %v1465 = vmul.f32 %v1464, %v1463
    %v1466 = vsub.f32 %v1462, %v1465
    %v1467 = vmul.f32 %v1466, 0.032258064
    %v1468 = vmax.f32 %v1467, 0.0
    %v1469 = vrsqrt.pop %v1468
    %v1470 = vmul.f32 %v1468, %v1469
    %vm1471 = vcmp.eq.f32.partialorder %v1468, inf
    %v1472 = vsel %vm1471, %v1468, %v1470
    %vm1473 = vcmp.eq.f32.partialorder %v1468, 0.0
    %v1474 = vand.u32 %v1468, 2147483648
    %v1475 = vsel %vm1473, %v1474, %v1472
    %v1476 = vadd.f32 %v1475, 1e-06
    %v1477 = vrcp.pop %v1476
    %v1479 = vrot.slane %v1463, 1
    %v1482 = vsub.f32 %v1439, %v1463
    %v1483 = vsub.f32 %v1440, %v1479
    %v1485 = vlaneseq
    %v1486 = vshrl.u32 %v1485, 7
    %v1487 = vsub.s32 0, %v1486
    %v1488 = vrot.slane %v1441, %v1487
    %v1492 = vrot.slane %v1483, 7
    %v1493 = vsel %vm1446, %v1492, %v1482
    %v1495 = vmul.f32 %v1488, %v1493
    %v1496 = vmul.f32 %v1495, %v1477
    %v1498 = vlaneseq
    %v1499 = vshrl.u32 %v1498, 7
    %v1500 = vsub.s32 0, %v1499
    %v1501 = vrot.slane %v1442, %v1500
    %v1503 = vadd.f32 %v1496, %v1501
    %v1504 = vpack.c.bf16 %v1503, %v1503
    %v1505 = vld [vmem:[%s16] sm:$0xf]
    %v1506 = vld [vmem:[%s16 + $0x4] sm:$0xf]
    %v1507 = vld [vmem:[%s16 + $0x8] sm:$0xf]
    %v1508 = vld [vmem:[%s16 + $0xc] sm:$0xf]
    %v1509 = vld [vmem:[%s17] sm:$0x1]
    %v1511 = vlaneseq
    %v1512 = vshrl.u32 %v1511, 7
    %v1513 = vsub.s32 0, %v1512
    %v1514 = vrot.slane %v1509, %v1513
    %v1520 = vunpack.c.l.b16 %v1505
    %v1521 = vunpack.c.l.b16 %v1506
    %v1522 = vunpack.c.l.b16 %v1507
    %v1523 = vunpack.c.l.b16 %v1508
    %v1524 = vpack.c.b16 %v1521, %v1520
    %v1525 = vpack.c.b16 %v1523, %v1522
    %v1529 = vsel %vm73, %v1504, 0
    %1531 = vmatprep.subr.bf16.mxu0 0
    %1532 = vmatpush1.bf16.msra.mxu0 %v1524
    %1533 = vmatprep.subr.bf16.mxu0 0
    %1534 = vmatpush1.bf16.msra.mxu0 %v1525
    %1535 = vmatprep.subr.bf16.mxu0 0
    %1536 = vmatpush1.bf16.msra.mxu0 0
    %1537 = vmatprep.subr.bf16.mxu0 0
    %1538 = vmatpush1.bf16.msra.mxu0 0
    %1539 = vmatprep.subr.bf16.mxu0 0
    %1540 = vmatpush1.bf16.msra.mxu0 0
    %1541 = vmatprep.subr.bf16.mxu0 0
    %1542 = vmatpush1.bf16.msra.mxu0 0
    %1543 = vmatprep.subr.bf16.mxu0 0
    %1544 = vmatpush1.bf16.msra.mxu0 0
    %1545 = vmatprep.subr.bf16.mxu0 0
    %1546 = vmatpush1.bf16.msra.mxu0 0
    %1547 = vmatprep.subr.bf16.mxu0 0
    %1548 = vmatpush1.bf16.msra.mxu0 0
    %1549 = vmatprep.subr.bf16.mxu0 0
    %1550 = vmatpush1.bf16.msra.mxu0 0
    %1551 = vmatprep.subr.bf16.mxu0 0
    %1552 = vmatpush1.bf16.msra.mxu0 0
    %1553 = vmatprep.subr.bf16.mxu0 0
    %1554 = vmatpush1.bf16.msra.mxu0 0
    %1555 = vmatprep.subr.bf16.mxu0 0
    %1556 = vmatpush1.bf16.msra.mxu0 0
    %1557 = vmatprep.subr.bf16.mxu0 0
    %1558 = vmatpush1.bf16.msra.mxu0 0
    %1559 = vmatprep.subr.bf16.mxu0 0
    %1560 = vmatpush1.bf16.msra.mxu0 0
    %1561 = vmatprep.subr.bf16.mxu0 0
    %1562 = vmatpush1.bf16.msra.mxu0 0
    %1563 = vmatprep.mubr.bf16.mxu0 0
    %1564 = vmatmul.mubr.bf16.gmra.mrb[0].mxu0 %v1529
    %v1565 = vpop.f32.mrb[0].mxu0
    %v1566 = vadd.f32 %v1514, %v1565
    %v1567 = vpop.f32.mrb[0].mxu0
    %v1568 = vpop.f32.mrb[0].mxu0
    %v1569 = vpop.f32.mrb[0].mxu0
    %1570 = vdwg.mxu0
    %v1571 = vtanh.pop %v1566
    %v1572 = vpack.c.bf16 %v1571, %v1571
    %v1573 = vld [vmem:[%s18] sm:$0xf]
    %v1574 = vld [vmem:[%s18 + $0x4] sm:$0xf]
    %v1575 = vld [vmem:[%s18 + $0x8] sm:$0xf]
    %v1576 = vld [vmem:[%s18 + $0xc] sm:$0xf]
    %v1577 = vld [vmem:[%s19] sm:$0x1]
    %v1579 = vlaneseq
    %v1580 = vshrl.u32 %v1579, 7
    %v1581 = vsub.s32 0, %v1580
    %v1582 = vrot.slane %v1577, %v1581
    %v1588 = vunpack.c.l.b16 %v1573
    %v1589 = vunpack.c.l.b16 %v1574
    %v1590 = vunpack.c.l.b16 %v1575
    %v1591 = vunpack.c.l.b16 %v1576
    %v1592 = vpack.c.b16 %v1589, %v1588
    %v1593 = vpack.c.b16 %v1591, %v1590
    %v1597 = vsel %vm73, %v1572, 0
    %1599 = vmatprep.subr.bf16.mxu0 0
    %1600 = vmatpush1.bf16.msra.mxu0 %v1592
    %1601 = vmatprep.subr.bf16.mxu0 0
    %1602 = vmatpush1.bf16.msra.mxu0 %v1593
    %1603 = vmatprep.subr.bf16.mxu0 0
    %1604 = vmatpush1.bf16.msra.mxu0 0
    %1605 = vmatprep.subr.bf16.mxu0 0
    %1606 = vmatpush1.bf16.msra.mxu0 0
    %1607 = vmatprep.subr.bf16.mxu0 0
    %1608 = vmatpush1.bf16.msra.mxu0 0
    %1609 = vmatprep.subr.bf16.mxu0 0
    %1610 = vmatpush1.bf16.msra.mxu0 0
    %1611 = vmatprep.subr.bf16.mxu0 0
    %1612 = vmatpush1.bf16.msra.mxu0 0
    %1613 = vmatprep.subr.bf16.mxu0 0
    %1614 = vmatpush1.bf16.msra.mxu0 0
    %1615 = vmatprep.subr.bf16.mxu0 0
    %1616 = vmatpush1.bf16.msra.mxu0 0
    %1617 = vmatprep.subr.bf16.mxu0 0
    %1618 = vmatpush1.bf16.msra.mxu0 0
    %1619 = vmatprep.subr.bf16.mxu0 0
    %1620 = vmatpush1.bf16.msra.mxu0 0
    %1621 = vmatprep.subr.bf16.mxu0 0
    %1622 = vmatpush1.bf16.msra.mxu0 0
    %1623 = vmatprep.subr.bf16.mxu0 0
    %1624 = vmatpush1.bf16.msra.mxu0 0
    %1625 = vmatprep.subr.bf16.mxu0 0
    %1626 = vmatpush1.bf16.msra.mxu0 0
    %1627 = vmatprep.subr.bf16.mxu0 0
    %1628 = vmatpush1.bf16.msra.mxu0 0
    %1629 = vmatprep.subr.bf16.mxu0 0
    %1630 = vmatpush1.bf16.msra.mxu0 0
    %1631 = vmatprep.mubr.bf16.mxu0 0
    %1632 = vmatmul.mubr.bf16.gmra.mrb[0].mxu0 %v1597
    %v1633 = vpop.f32.mrb[0].mxu0
    %v1634 = vadd.f32 %v1582, %v1633
    %v1635 = vpop.f32.mrb[0].mxu0
    %v1636 = vpop.f32.mrb[0].mxu0
    %v1637 = vpop.f32.mrb[0].mxu0
    %1638 = vdwg.mxu0
    %vm1639 = vcmask 25600
    %1640 = vst.msk [vmem:[#allocation2] sm:$0x3] %vm1639, %v1634
    // Predicated region
    $region82: #{transformer_cls_forward.1} parent=1 // pred_check
      _
    $region83: #{transformer_cls_forward.1} parent=1 // pred_check_branch
      %1642 = sbr.rel (0) target = $region85
    $region84: #{transformer_cls_forward.1} parent=1 // pred_region
      %s1644 = ssub.s32 32, 32
      %1645 = vsyncadd [#allocation3], %s1644
      %s1647 = sshll.u32 [#allocation2], 4
      %s1648 = int_to_ptr.vmem [resolvable:$true] %s1647
      %1650 = dma.vmem_to_hbm [thread:$0]  %s1648, 32, %s20, [#allocation3]
    $region85: #{transformer_cls_forward.1} parent=1 // pred_fallthru
      _
    // Predicated region
    $region86: #{transformer_cls_forward.1} parent=1 // pred_check
      _
    $region87: #{transformer_cls_forward.1} parent=1 // pred_check_branch
      %1652 = sbr.rel (0) target = $region89
    $region88: #{transformer_cls_forward.1} parent=1 // pred_region
      %1653 = dma.done [#allocation3], 32
    $region89: #{transformer_cls_forward.1} parent=1 // pred_fallthru
      _
    %1654 = vsyncpa [#allocation3], 1

</llo_original>
